<compile_context>
chip_gen: v6e
topology: v6e:2x2x1
jax: 0.10.0
libtpu: 0.0.40
codegen_flags: <defaults>
</compile_context>

<pallas_src>
import functools

import jax
import jax.numpy as jnp
import numpy as np
from jax import lax
from jax.experimental import pallas as pl
from jax.experimental.pallas import tpu as pltpu

EPS_BN = 1e-5
EDGE_DIM = 7          # raw box-delta edge attribute width
EDGE_PAD = 8          # padded to a sublane-friendly width for the kernel


# ----------------------------------------------------------------------------
# Pallas kernel: fused EdgeConv stack (all layers) + outer concat, per batch tile.
# ----------------------------------------------------------------------------
def fused_gnn_kernel(x_ref, nbr_ref, e_ref, wboth_ref, we_ref, b_ref,
                     s2_ref, t2_ref, o_ref, *, K, n_layers, n_nodes, c_out,
                     out_width, skip):
    N = n_nodes
    x0 = x_ref[...]                                      # (N, C) f32
    C = x0.shape[-1]

    # One-hot gather selector, built once per tile directly in bf16 via a single
    # broadcast compare (indices are local, k-major, as a 1-lane column).
    idx = nbr_ref[...]                                   # (K*N, 1) int32
    lane = lax.broadcasted_iota(jnp.int32, (K * N, N), 1)
    onehot = (idx == lane).astype(jnp.bfloat16)          # (K*N, N), exact 0/1
    # Fuse the edge-embedding matmul into the gather matmul: lane-concat the
    # (k-major, bf16, 8-lane padded) edge attributes onto the selector.
    sel = jnp.concatenate([onehot, e_ref[...]], axis=1)  # (K*N, N+EDGE_PAD)

    h = x0
    pieces = [x0]
    for l in range(n_layers):                            # layers statically unrolled
        h_bf = h.astype(jnp.bfloat16)

        # (1) x @ [Wd' | (Ws-Wd)'] : projection + self term in one MXU push.
        both = jnp.dot(h_bf, wboth_ref[l],
                       preferred_element_type=jnp.float32)          # (N, 2*c_out)
        proj = both[:, :c_out].astype(jnp.bfloat16)                  # x@Wd'
        selfp = both[:, c_out:] + b_ref[l]                           # x@(Ws-Wd)' + b'

        # (2) [onehot | e] @ [proj ; We'] : gather projected neighbors + edge term.
        wsel = jnp.concatenate([proj, we_ref[l]], axis=0)            # (N+8, c_out)
        msg = jnp.dot(sel, wsel, preferred_element_type=jnp.float32)  # (K*N, c_out)

        # aggr='max' over the K neighbors (k-major row blocks); self term and ReLU
        # hoisted out of the max (valid: selfp is common to all k, ReLU monotone).
        agg = msg[0:N]
        for k in range(1, K):
            agg = jnp.maximum(agg, msg[k * N:(k + 1) * N])
        agg = jnp.maximum(agg + selfp, 0.0)

        h_new = agg * s2_ref[l] + t2_ref[l]                          # eval-mode bn2
        if skip:
            h_new = h_new + h                                        # EdgeConv skip
        h = h_new
        pieces.append(h)
        # TODO(synk): PyG zero-fills nodes with no incoming edges; with knn_graph
        # and K < nodes-per-batch every node has exactly K neighbors, so not handled.

    # Lane-dense related_features slab [x | h_1 | ... | h_L | 0-pad to 128 lanes].
    used = C + n_layers * c_out
    if out_width > used:
        pieces.append(jnp.zeros((N, out_width - used), jnp.float32))
    o_ref[...] = jnp.concatenate(pieces, axis=1)


def fused_edgeconv_stack(x, nbr_col, e_flat, stacked, *, B, N, K, skip=True):
    """x: (B*N, C) f32; nbr_col: (B*K*N, 1) int32 local indices (k-major per batch);
    e_flat: (B*K*N, 8) bf16 edge attrs (k-major per batch)."""
    BN, C = x.shape
    L, c_in, two_c = stacked["wboth"].shape
    c_out = two_c // 2
    assert c_in == C and c_out == C, "EdgeConv skip connections need equal in/out dims"
    assert BN == B * N
    assert (N % 8 == 0) or B == 1, "nodes-per-batch must be sublane aligned"
    out_width = ((C + L * c_out + 127) // 128) * 128     # lane-dense output slab

    kern = functools.partial(fused_gnn_kernel, K=K, n_layers=L, n_nodes=N,
                             c_out=c_out, out_width=out_width, skip=skip)
    wmap = lambda t: (0, 0, 0)                           # weights resident, DMAed once

    return pl.pallas_call(
        kern,
        out_shape=jax.ShapeDtypeStruct((BN, out_width), jnp.float32),
        grid=(B,),
        in_specs=[
            pl.BlockSpec((N, C), lambda t: (t, 0)),                     # node features
            pl.BlockSpec((K * N, 1), lambda t: (t, 0)),                 # local knn idx
            pl.BlockSpec((K * N, EDGE_PAD), lambda t: (t, 0)),          # edge attrs
            pl.BlockSpec((L, C, 2 * c_out), wmap),                      # [Wd'|(Ws-Wd)'] bf16
            pl.BlockSpec((L, EDGE_PAD, c_out), wmap),                   # We' bf16
            pl.BlockSpec((L, 1, c_out), wmap),                          # bias' (bn1-folded)
            pl.BlockSpec((L, 1, c_out), wmap),                          # bn2 scale
            pl.BlockSpec((L, 1, c_out), wmap),                          # bn2 shift
        ],
        out_specs=pl.BlockSpec((N, out_width), lambda t: (t, 0)),
        compiler_params=pltpu.CompilerParams(
            dimension_semantics=("parallel",),           # tiles are independent now
            vmem_limit_bytes=64 * 1024 * 1024),
    )(x, nbr_col, e_flat, stacked["wboth"], stacked["we"],
      stacked["b"], stacked["s2"], stacked["t2"])


# ----------------------------------------------------------------------------
# Glue (plain JAX): graph construction, parameter setup / folding.
# ----------------------------------------------------------------------------
def knn_graph(pos, batch_vec, k):
    """knn_graph(loop=False, flow='source_to_target') restricted to same batch."""
    # TODO(synk): O(BN^2) dense distances in plain XLA; for large BN this should
    # become a tiled per-batch Pallas top-k distance kernel.
    BN = pos.shape[0]
    d2 = jnp.sum((pos[:, None, :] - pos[None, :, :]) ** 2, axis=-1)
    mask = (batch_vec[:, None] == batch_vec[None, :]) & (~jnp.eye(BN, dtype=bool))
    d2 = jnp.where(mask, d2, jnp.inf)
    _, nbr = lax.top_k(-d2, k)                 # (BN, K): K nearest sources per target
    return nbr


def init_edgeconv_params(key, c_in, c_out, edge_dim=EDGE_DIM):
    """Matches EdgeConv.__init__: Linear(2*c_in+edge_dim -> c_out), BN(c_out), BN(c_out)."""
    in_dim = 2 * c_in + edge_dim
    k_w, k_b = jax.random.split(key)
    a = float(np.sqrt(6.0 / (in_dim + c_out)))                     # xavier_uniform_
    w = jax.random.uniform(k_w, (in_dim, c_out), jnp.float32, -a, a)
    bound = float(1.0 / np.sqrt(in_dim))                           # torch Linear bias init
    b = jax.random.uniform(k_b, (1, c_out), jnp.float32, -bound, bound)
    # eval-mode BN with fresh running stats folds to scale=1/sqrt(1+eps), shift=0
    bn_scale = jnp.full((1, c_out), 1.0 / np.sqrt(1.0 + EPS_BN), jnp.float32)
    bn_shift = jnp.zeros((1, c_out), jnp.float32)
    return dict(
        w_diff=w[:c_in],                 # multiplies (x_j - x_i)
        w_self=w[c_in:2 * c_in],         # multiplies x_i
        w_edge=w[2 * c_in:],             # multiplies edge_attr
        bias=b,
        bn1_scale=bn_scale, bn1_shift=bn_shift,
        bn2_scale=bn_scale, bn2_shift=bn_shift,
    )


def fold_and_stack(params_list):
    """Fold bn1 + bias into the linear weights, fuse Wd/(Ws-Wd) along lanes,
    pad the edge weight to 8 rows, cast to bf16, stack across layers."""
    wboth, we, b, s2, t2 = [], [], [], [], []
    for p in params_list:
        s1, t1 = p["bn1_scale"], p["bn1_shift"]
        wd = p["w_diff"] * s1
        wsd = (p["w_self"] - p["w_diff"]) * s1
        wboth.append(jnp.concatenate([wd, wsd], axis=1).astype(jnp.bfloat16))
        we_p = jnp.pad(p["w_edge"], ((0, EDGE_PAD - p["w_edge"].shape[0]), (0, 0)))
        we.append((we_p * s1).astype(jnp.bfloat16))
        b.append(p["bias"] * s1 + t1)
        s2.append(p["bn2_scale"])
        t2.append(p["bn2_shift"])
    return dict(wboth=jnp.stack(wboth), we=jnp.stack(we), b=jnp.stack(b),
                s2=jnp.stack(s2), t2=jnp.stack(t2))


def gnn_forward(batch_dict, params_list, *, k=4, edgeconv_skip=True, outer_skip=True):
    pooled = batch_dict["pooled_features"]            # (B, N, C)
    rois = batch_dict["rois"]                         # (B, N, 7)
    B, N, C = pooled.shape

    boxes = rois.reshape(B * N, 7).astype(jnp.float32)
    x = pooled.reshape(B * N, C).astype(jnp.float32)
    batch_vec = jnp.repeat(jnp.arange(B), N)

    # GRAPH.SPACE == 'R3', DYNAMIC == False: edges from box centers, built once.
    nbr = knn_graph(boxes[:, :3], batch_vec, k)                         # (BN, K) global
    edge_index = jnp.stack(
        [nbr.reshape(-1), jnp.repeat(jnp.arange(B * N), k)], axis=0)    # (2, E)
    batch_dict["gnn_edges"] = edge_index

    # EDGE_EMBEDDING: edge_attr = boxes[from] - boxes[to]; pad 7 -> 8 lanes, lay out
    # k-major within each batch element so the kernel uses it without a transpose.
    e = boxes[nbr] - boxes[:, None, :]                                  # (BN, K, 7)
    e = jnp.pad(e, ((0, 0), (0, 0), (0, EDGE_PAD - EDGE_DIM)))          # (BN, K, 8)
    e_flat = (e.reshape(B, N, k, EDGE_PAD).transpose(0, 2, 1, 3)
               .reshape(B * k * N, EDGE_PAD).astype(jnp.bfloat16))

    # Local (within-batch) indices, k-major, as a 1-lane column for the selector.
    nbr_local = (nbr - (batch_vec * N)[:, None]).astype(jnp.int32)      # (BN, K)
    nbr_col = (nbr_local.reshape(B, N, k).transpose(0, 2, 1)
               .reshape(B * k * N, 1))

    stacked = fold_and_stack(params_list)
    rel = fused_edgeconv_stack(x, nbr_col, e_flat, stacked,
                               B=B, N=N, K=k, skip=edgeconv_skip)       # (BN, 128)

    L = len(params_list)
    c_out = params_list[-1]["w_diff"].shape[1]
    if outer_skip:
        batch_dict["related_features"] = rel[:, :C + L * c_out]
    else:
        batch_dict["related_features"] = rel[:, C + (L - 1) * c_out:C + L * c_out]
    return batch_dict


# ----------------------------------------------------------------------------
# Pure-JAX reference (f32, unfolded BN) for the correctness check.
# ----------------------------------------------------------------------------
def edge_conv_ref(x, x_nb, e, p, skip):
    hi = jax.lax.Precision.HIGHEST
    diff = x_nb - x[:, None, :]
    msg = (jnp.einsum("nkc,cd->nkd", diff, p["w_diff"], precision=hi)
           + jnp.einsum("nc,cd->nd", x, p["w_self"], precision=hi)[:, None, :]
           + jnp.einsum("nke,ed->nkd", e, p["w_edge"], precision=hi)
           + p["bias"])
    msg = msg * p["bn1_scale"] + p["bn1_shift"]
    msg = jnp.maximum(msg, 0.0)
    out = msg.max(axis=1)
    out = out * p["bn2_scale"] + p["bn2_shift"]
    if skip:
        out = out + x
    return out


def gnn_forward_ref(batch_dict, params_list, *, k=4):
    pooled = batch_dict["pooled_features"]
    rois = batch_dict["rois"]
    B, N, C = pooled.shape
    boxes = rois.reshape(B * N, 7)
    x = pooled.reshape(B * N, C)
    batch_vec = jnp.repeat(jnp.arange(B), N)
    nbr = knn_graph(boxes[:, :3], batch_vec, k)
    edge_attr = boxes[nbr] - boxes[:, None, :]
    feats = [x]
    for p in params_list:
        x = edge_conv_ref(x, x[nbr], edge_attr, p, skip=True)
        feats.append(x)
    return jnp.concatenate(feats, axis=-1)


if __name__ == "__main__":
    B, N, C = 2, 128, 32          # pooled_feature_dim = 32 (small demo config)
    K = 4
    LAYERS = [32, 32]

    key = jax.random.PRNGKey(0)
    k1, k2, k3, kp = jax.random.split(key, 4)
    pooled_features = jax.random.normal(k1, (B, N, C), dtype=jnp.float32)
    rois = jax.random.normal(k2, (B, N, 7), dtype=jnp.float32) * 5.0
    roi_labels = jax.random.randint(k3, (B, N), 1, 4)   # unused (CONNECT_ONLY_SAME_CLASS=False)

    batch_dict = {
        "pooled_features": pooled_features,
        "rois": rois,
        "roi_labels": roi_labels,
    }

    params_list = []
    c_in = C
    for pk, c_out in zip(jax.random.split(kp, len(LAYERS)), LAYERS):
        params_list.append(init_edgeconv_params(pk, c_in, c_out))
        c_in = c_out

    out_dict = gnn_forward(dict(batch_dict), params_list, k=K)
    related = jax.block_until_ready(out_dict["related_features"])   # (B*N, C + sum(LAYERS))

    ref = jax.block_until_ready(gnn_forward_ref(dict(batch_dict), params_list, k=K))

    # The pooled-feature columns are a pure pass-through -> must be exact.
    np.testing.assert_array_equal(np.asarray(related[:, :C]), np.asarray(ref[:, :C]))
    # bf16 MXU operands (f32 accumulation) vs f32 reference -> loosened tolerance.
    np.testing.assert_allclose(np.asarray(related), np.asarray(ref), rtol=5e-2, atol=1e-1)

    print("KERNEL_OK")
</pallas_src>

<mosaic_0001>
module attributes {stable_mosaic.version = 11 : i64} {
  func.func @fused_gnn_kernel(%arg0: i32, %arg1: memref<128x32xf32, #tpu.memory_space<vmem>>, %arg2: memref<512x1xi32, #tpu.memory_space<vmem>>, %arg3: memref<512x8xbf16, #tpu.memory_space<vmem>>, %arg4: memref<2x32x64xbf16, #tpu.memory_space<vmem>>, %arg5: memref<2x8x32xbf16, #tpu.memory_space<vmem>>, %arg6: memref<2x1x32xf32, #tpu.memory_space<vmem>>, %arg7: memref<2x1x32xf32, #tpu.memory_space<vmem>>, %arg8: memref<2x1x32xf32, #tpu.memory_space<vmem>>, %arg9: memref<128x128xf32, #tpu.memory_space<vmem>>) attributes {dimension_semantics = [#tpu.dimension_semantics<parallel>], iteration_bounds = array<i64: 2>, scalar_prefetch = 0 : i64, scratch_operands = 0 : i64, tpu.core_type = #tpu.core_type<tc>, window_params = [{transform_indices = @transform_0, window_bounds = array<i64: 128, 32>}, {transform_indices = @transform_1, window_bounds = array<i64: 512, 1>}, {transform_indices = @transform_2, window_bounds = array<i64: 512, 8>}, {pipeline_mode = #tpu.pipeline_mode<synchronous>, transform_indices = @transform_3, window_bounds = array<i64: 2, 32, 64>}, {pipeline_mode = #tpu.pipeline_mode<synchronous>, transform_indices = @transform_4, window_bounds = array<i64: 2, 8, 32>}, {pipeline_mode = #tpu.pipeline_mode<synchronous>, transform_indices = @transform_5, window_bounds = array<i64: 2, 1, 32>}, {pipeline_mode = #tpu.pipeline_mode<synchronous>, transform_indices = @transform_6, window_bounds = array<i64: 2, 1, 32>}, {pipeline_mode = #tpu.pipeline_mode<synchronous>, transform_indices = @transform_7, window_bounds = array<i64: 2, 1, 32>}, {transform_indices = @transform_8, window_bounds = array<i64: 128, 128>}]} {
    %c0 = arith.constant 0 : index
    %c0_0 = arith.constant 0 : index
    %0 = vector.load %arg1[%c0, %c0_0] : memref<128x32xf32, #tpu.memory_space<vmem>>, vector<128x32xf32>
    %c0_1 = arith.constant 0 : index
    %c0_2 = arith.constant 0 : index
    %1 = vector.load %arg2[%c0_1, %c0_2] : memref<512x1xi32, #tpu.memory_space<vmem>>, vector<512x1xi32>
    %2 = tpu.iota {dimensions = array<i32: 1>} : vector<512x128xi32>
    %3 = vector.broadcast %1 : vector<512x1xi32> to vector<512x128xi32>
    %4 = arith.cmpi eq, %3, %2 : vector<512x128xi32>
    %5 = arith.extui %4 : vector<512x128xi1> to vector<512x128xi32>
    %6 = arith.sitofp %5 : vector<512x128xi32> to vector<512x128xf32>
    %7 = arith.truncf %6 : vector<512x128xf32> to vector<512x128xbf16>
    %c0_3 = arith.constant 0 : index
    %c0_4 = arith.constant 0 : index
    %8 = vector.load %arg3[%c0_3, %c0_4] : memref<512x8xbf16, #tpu.memory_space<vmem>>, vector<512x8xbf16>
    %9 = tpu.concatenate %7, %8 in 1 : vector<512x128xbf16>, vector<512x8xbf16> -> vector<512x136xbf16>
    %10 = arith.truncf %0 : vector<128x32xf32> to vector<128x32xbf16>
    %c0_5 = arith.constant 0 : index
    %c0_6 = arith.constant 0 : index
    %c0_7 = arith.constant 0 : index
    %11 = vector.load %arg4[%c0_5, %c0_6, %c0_7] : memref<2x32x64xbf16, #tpu.memory_space<vmem>>, vector<1x32x64xbf16>
    %12 = vector.shape_cast %11 : vector<1x32x64xbf16> to vector<32x64xbf16>
    %cst = arith.constant dense<0.000000e+00> : vector<128x64xf32>
    %13 = tpu.matmul %10, %12, %cst {dimension_numbers = #tpu.dot_dimension_numbers<[1], [0], [0], [1], [0, 0, 1, 1], [], []>} : vector<128x32xbf16>, vector<32x64xbf16>, vector<128x64xf32> -> vector<128x64xf32>
    %14 = vector.extract_strided_slice %13 {offsets = [0, 0], sizes = [128, 32], strides = [1, 1]} : vector<128x64xf32> to vector<128x32xf32>
    %15 = arith.truncf %14 : vector<128x32xf32> to vector<128x32xbf16>
    %16 = vector.extract_strided_slice %13 {offsets = [0, 32], sizes = [128, 32], strides = [1, 1]} : vector<128x64xf32> to vector<128x32xf32>
    %c0_8 = arith.constant 0 : index
    %c0_9 = arith.constant 0 : index
    %c0_10 = arith.constant 0 : index
    %17 = vector.load %arg6[%c0_8, %c0_9, %c0_10] : memref<2x1x32xf32, #tpu.memory_space<vmem>>, vector<1x1x32xf32>
    %18 = vector.shape_cast %17 : vector<1x1x32xf32> to vector<1x32xf32>
    %19 = vector.broadcast %18 : vector<1x32xf32> to vector<128x32xf32>
    %20 = arith.addf %16, %19 : vector<128x32xf32>
    %c0_11 = arith.constant 0 : index
    %c0_12 = arith.constant 0 : index
    %c0_13 = arith.constant 0 : index
    %21 = vector.load %arg5[%c0_11, %c0_12, %c0_13] : memref<2x8x32xbf16, #tpu.memory_space<vmem>>, vector<1x8x32xbf16>
    %22 = vector.shape_cast %21 : vector<1x8x32xbf16> to vector<8x32xbf16>
    %23 = tpu.concatenate %15, %22 in 0 : vector<128x32xbf16>, vector<8x32xbf16> -> vector<136x32xbf16>
    %cst_14 = arith.constant dense<0.000000e+00> : vector<512x32xf32>
    %24 = tpu.matmul %9, %23, %cst_14 {dimension_numbers = #tpu.dot_dimension_numbers<[1], [0], [0], [1], [0, 0, 1, 1], [], []>} : vector<512x136xbf16>, vector<136x32xbf16>, vector<512x32xf32> -> vector<512x32xf32>
    %25 = vector.extract_strided_slice %24 {offsets = [0, 0], sizes = [128, 32], strides = [1, 1]} : vector<512x32xf32> to vector<128x32xf32>
    %26 = vector.extract_strided_slice %24 {offsets = [128, 0], sizes = [128, 32], strides = [1, 1]} : vector<512x32xf32> to vector<128x32xf32>
    %27 = arith.maximumf %25, %26 : vector<128x32xf32>
    %28 = vector.extract_strided_slice %24 {offsets = [256, 0], sizes = [128, 32], strides = [1, 1]} : vector<512x32xf32> to vector<128x32xf32>
    %29 = arith.maximumf %27, %28 : vector<128x32xf32>
    %30 = vector.extract_strided_slice %24 {offsets = [384, 0], sizes = [128, 32], strides = [1, 1]} : vector<512x32xf32> to vector<128x32xf32>
    %31 = arith.maximumf %29, %30 : vector<128x32xf32>
    %32 = arith.addf %31, %20 : vector<128x32xf32>
    %cst_15 = arith.constant 0.000000e+00 : f32
    %33 = vector.broadcast %cst_15 : f32 to vector<128x32xf32>
    %34 = arith.maximumf %32, %33 : vector<128x32xf32>
    %c0_16 = arith.constant 0 : index
    %c0_17 = arith.constant 0 : index
    %c0_18 = arith.constant 0 : index
    %35 = vector.load %arg7[%c0_16, %c0_17, %c0_18] : memref<2x1x32xf32, #tpu.memory_space<vmem>>, vector<1x1x32xf32>
    %36 = vector.shape_cast %35 : vector<1x1x32xf32> to vector<1x32xf32>
    %37 = vector.broadcast %36 : vector<1x32xf32> to vector<128x32xf32>
    %38 = arith.mulf %34, %37 : vector<128x32xf32>
    %c0_19 = arith.constant 0 : index
    %c0_20 = arith.constant 0 : index
    %c0_21 = arith.constant 0 : index
    %39 = vector.load %arg8[%c0_19, %c0_20, %c0_21] : memref<2x1x32xf32, #tpu.memory_space<vmem>>, vector<1x1x32xf32>
    %40 = vector.shape_cast %39 : vector<1x1x32xf32> to vector<1x32xf32>
    %41 = vector.broadcast %40 : vector<1x32xf32> to vector<128x32xf32>
    %42 = arith.addf %38, %41 : vector<128x32xf32>
    %43 = arith.addf %42, %0 : vector<128x32xf32>
    %44 = arith.truncf %43 : vector<128x32xf32> to vector<128x32xbf16>
    %c1 = arith.constant 1 : index
    %c0_22 = arith.constant 0 : index
    %c0_23 = arith.constant 0 : index
    %45 = vector.load %arg4[%c1, %c0_22, %c0_23] : memref<2x32x64xbf16, #tpu.memory_space<vmem>>, vector<1x32x64xbf16>
    %46 = vector.shape_cast %45 : vector<1x32x64xbf16> to vector<32x64xbf16>
    %cst_24 = arith.constant dense<0.000000e+00> : vector<128x64xf32>
    %47 = tpu.matmul %44, %46, %cst_24 {dimension_numbers = #tpu.dot_dimension_numbers<[1], [0], [0], [1], [0, 0, 1, 1], [], []>} : vector<128x32xbf16>, vector<32x64xbf16>, vector<128x64xf32> -> vector<128x64xf32>
    %48 = vector.extract_strided_slice %47 {offsets = [0, 0], sizes = [128, 32], strides = [1, 1]} : vector<128x64xf32> to vector<128x32xf32>
    %49 = arith.truncf %48 : vector<128x32xf32> to vector<128x32xbf16>
    %50 = vector.extract_strided_slice %47 {offsets = [0, 32], sizes = [128, 32], strides = [1, 1]} : vector<128x64xf32> to vector<128x32xf32>
    %c1_25 = arith.constant 1 : index
    %c0_26 = arith.constant 0 : index
    %c0_27 = arith.constant 0 : index
    %51 = vector.load %arg6[%c1_25, %c0_26, %c0_27] : memref<2x1x32xf32, #tpu.memory_space<vmem>>, vector<1x1x32xf32>
    %52 = vector.shape_cast %51 : vector<1x1x32xf32> to vector<1x32xf32>
    %53 = vector.broadcast %52 : vector<1x32xf32> to vector<128x32xf32>
    %54 = arith.addf %50, %53 : vector<128x32xf32>
    %c1_28 = arith.constant 1 : index
    %c0_29 = arith.constant 0 : index
    %c0_30 = arith.constant 0 : index
    %55 = vector.load %arg5[%c1_28, %c0_29, %c0_30] : memref<2x8x32xbf16, #tpu.memory_space<vmem>>, vector<1x8x32xbf16>
    %56 = vector.shape_cast %55 : vector<1x8x32xbf16> to vector<8x32xbf16>
    %57 = tpu.concatenate %49, %56 in 0 : vector<128x32xbf16>, vector<8x32xbf16> -> vector<136x32xbf16>
    %cst_31 = arith.constant dense<0.000000e+00> : vector<512x32xf32>
    %58 = tpu.matmul %9, %57, %cst_31 {dimension_numbers = #tpu.dot_dimension_numbers<[1], [0], [0], [1], [0, 0, 1, 1], [], []>} : vector<512x136xbf16>, vector<136x32xbf16>, vector<512x32xf32> -> vector<512x32xf32>
    %59 = vector.extract_strided_slice %58 {offsets = [0, 0], sizes = [128, 32], strides = [1, 1]} : vector<512x32xf32> to vector<128x32xf32>
    %60 = vector.extract_strided_slice %58 {offsets = [128, 0], sizes = [128, 32], strides = [1, 1]} : vector<512x32xf32> to vector<128x32xf32>
    %61 = arith.maximumf %59, %60 : vector<128x32xf32>
    %62 = vector.extract_strided_slice %58 {offsets = [256, 0], sizes = [128, 32], strides = [1, 1]} : vector<512x32xf32> to vector<128x32xf32>
    %63 = arith.maximumf %61, %62 : vector<128x32xf32>
    %64 = vector.extract_strided_slice %58 {offsets = [384, 0], sizes = [128, 32], strides = [1, 1]} : vector<512x32xf32> to vector<128x32xf32>
    %65 = arith.maximumf %63, %64 : vector<128x32xf32>
    %66 = arith.addf %65, %54 : vector<128x32xf32>
    %cst_32 = arith.constant 0.000000e+00 : f32
    %67 = vector.broadcast %cst_32 : f32 to vector<128x32xf32>
    %68 = arith.maximumf %66, %67 : vector<128x32xf32>
    %c1_33 = arith.constant 1 : index
    %c0_34 = arith.constant 0 : index
    %c0_35 = arith.constant 0 : index
    %69 = vector.load %arg7[%c1_33, %c0_34, %c0_35] : memref<2x1x32xf32, #tpu.memory_space<vmem>>, vector<1x1x32xf32>
    %70 = vector.shape_cast %69 : vector<1x1x32xf32> to vector<1x32xf32>
    %71 = vector.broadcast %70 : vector<1x32xf32> to vector<128x32xf32>
    %72 = arith.mulf %68, %71 : vector<128x32xf32>
    %c1_36 = arith.constant 1 : index
    %c0_37 = arith.constant 0 : index
    %c0_38 = arith.constant 0 : index
    %73 = vector.load %arg8[%c1_36, %c0_37, %c0_38] : memref<2x1x32xf32, #tpu.memory_space<vmem>>, vector<1x1x32xf32>
    %74 = vector.shape_cast %73 : vector<1x1x32xf32> to vector<1x32xf32>
    %75 = vector.broadcast %74 : vector<1x32xf32> to vector<128x32xf32>
    %76 = arith.addf %72, %75 : vector<128x32xf32>
    %77 = arith.addf %76, %43 : vector<128x32xf32>
    %cst_39 = arith.constant 0.000000e+00 : f32
    %78 = vector.broadcast %cst_39 : f32 to vector<128x32xf32>
    %79 = tpu.concatenate %0, %43, %77, %78 in 1 : vector<128x32xf32>, vector<128x32xf32>, vector<128x32xf32>, vector<128x32xf32> -> vector<128x128xf32>
    %c0_40 = arith.constant 0 : index
    %c0_41 = arith.constant 0 : index
    %80 = vector.load %arg9[%c0_40, %c0_41] : memref<128x128xf32, #tpu.memory_space<vmem>>, vector<128x128xf32>
    tpu.vector_store %arg9[%c0_40, %c0_41], %79 {strides = array<i32>} : memref<128x128xf32, #tpu.memory_space<vmem>>, vector<128x128xf32>,
    return
  }
  func.func @transform_0(%arg0: i32) -> (i32, i32) {
    %c0_i32 = arith.constant 0 : i32
    %c0_i32_0 = arith.constant 0 : i32
    return %arg0, %c0_i32 : i32, i32
  }
  func.func @transform_1(%arg0: i32) -> (i32, i32) {
    %c0_i32 = arith.constant 0 : i32
    %c0_i32_0 = arith.constant 0 : i32
    return %arg0, %c0_i32 : i32, i32
  }
  func.func @transform_2(%arg0: i32) -> (i32, i32) {
    %c0_i32 = arith.constant 0 : i32
    %c0_i32_0 = arith.constant 0 : i32
    return %arg0, %c0_i32 : i32, i32
  }
  func.func @transform_3(%arg0: i32) -> (i32, i32, i32) {
    %c0_i32 = arith.constant 0 : i32
    %c0_i32_0 = arith.constant 0 : i32
    %c0_i32_1 = arith.constant 0 : i32
    %c0_i32_2 = arith.constant 0 : i32
    return %c0_i32, %c0_i32_0, %c0_i32_1 : i32, i32, i32
  }
  func.func @transform_4(%arg0: i32) -> (i32, i32, i32) {
    %c0_i32 = arith.constant 0 : i32
    %c0_i32_0 = arith.constant 0 : i32
    %c0_i32_1 = arith.constant 0 : i32
    %c0_i32_2 = arith.constant 0 : i32
    return %c0_i32, %c0_i32_0, %c0_i32_1 : i32, i32, i32
  }
  func.func @transform_5(%arg0: i32) -> (i32, i32, i32) {
    %c0_i32 = arith.constant 0 : i32
    %c0_i32_0 = arith.constant 0 : i32
    %c0_i32_1 = arith.constant 0 : i32
    %c0_i32_2 = arith.constant 0 : i32
    return %c0_i32, %c0_i32_0, %c0_i32_1 : i32, i32, i32
  }
  func.func @transform_6(%arg0: i32) -> (i32, i32, i32) {
    %c0_i32 = arith.constant 0 : i32
    %c0_i32_0 = arith.constant 0 : i32
    %c0_i32_1 = arith.constant 0 : i32
    %c0_i32_2 = arith.constant 0 : i32
    return %c0_i32, %c0_i32_0, %c0_i32_1 : i32, i32, i32
  }
  func.func @transform_7(%arg0: i32) -> (i32, i32, i32) {
    %c0_i32 = arith.constant 0 : i32
    %c0_i32_0 = arith.constant 0 : i32
    %c0_i32_1 = arith.constant 0 : i32
    %c0_i32_2 = arith.constant 0 : i32
    return %c0_i32, %c0_i32_0, %c0_i32_1 : i32, i32, i32
  }
  func.func @transform_8(%arg0: i32) -> (i32, i32) {
    %c0_i32 = arith.constant 0 : i32
    %c0_i32_0 = arith.constant 0 : i32
    return %arg0, %c0_i32 : i32, i32
  }
}

</mosaic_0001>

<llo_original>
// kernel: tpu_custom_call.1
$region0: #{tpu_custom_call.1}
  #allocation0 [shape = 'u32[]', space=smem, size = 0x4, offset = 0x4, fixed_abs, tag = 'smem constant byte address 0x4 - core index']
  #allocation1 [shape = 'u32[144,128]{1,0:T(1,128)}', space=vmem, size = 0x12000, scoped, tag = 'internal scratch']
  %s0 = inlined_call_operand.vmem [shape: f32[256,32], index: 0, kind: input, shape index: {}]
  %s1 = inlined_call_operand.vmem [shape: s32[1024,1], index: 1, kind: input, shape index: {}]
  %s2 = inlined_call_operand.vmem [shape: bf16[1024,8], index: 2, kind: input, shape index: {}]
  %s3 = inlined_call_operand.vmem [shape: bf16[2,32,64], index: 3, kind: input, shape index: {}]
  %s4 = inlined_call_operand.vmem [shape: bf16[2,8,32], index: 4, kind: input, shape index: {}]
  %s5 = inlined_call_operand.vmem [shape: f32[2,1,32], index: 5, kind: input, shape index: {}]
  %s6 = inlined_call_operand.vmem [shape: f32[2,1,32], index: 6, kind: input, shape index: {}]
  %s7 = inlined_call_operand.vmem [shape: f32[2,1,32], index: 7, kind: input, shape index: {}]
  %s8 = inlined_call_operand.hbm [shape: f32[256,128], index: 8, kind: output, shape index: {}]
  %s9 = sld [smem:[#allocation0]]
  $region65: #{tpu_custom_call.1} parent=0
    _
  %s11 = ssub.s32 1, %s9
  %s12 = scalar_select 0, %s11, %s9
  $region1: #{tpu_custom_call.1} parent=0
    #allocation2 [shape = 'u8[131072]{0}', space=vmem, size = 0x20000, scoped, tag = 'output window, operand 0']
    #allocation3 [shape = 's32[2]{0}', space=sflag, size = 0x8, scoped, tag = 'scoped memory for tpu_custom_call.1']
    %13 = vsyncpa [#allocation3], 0
    %s14 = scalar_lea.sflag [#allocation3], 1
    %15 = vsyncpa %s14, 0
    loop: start=0, step=1, limit=4
    $region2: #{tpu_custom_call.1} parent=1 // loop_pre_header
      _
    $region3: #{tpu_custom_call.1} parent=1 // loop_header
      %s17 = sphi 0, %s21
      %p18 = scmp.ge.s32.totalorder %s17, 4
      %s27 = sphi 0, %s29
      %s30 = sphi 0, %s27
      %s31 = sphi 0, %s30
      %s47 = sphi 0, %s31
      %s53 = sphi 0, %s55
      %s56 = sphi 0, %s53
      %s57 = sphi 0, %s56
      %s73 = sphi 0, %s57
      %s79 = sphi 0, %s81
      %s82 = sphi 0, %s79
      %s83 = sphi 0, %s82
      %s99 = sphi 0, %s83
      %s103 = sphi 0, %s103
      %s105 = sphi 0, %s103
      %s106 = sphi 0, %s105
      %s120 = sphi 0, %s106
      %s124 = sphi 0, %s124
      %s126 = sphi 0, %s124
      %s127 = sphi 0, %s126
      %s141 = sphi 0, %s127
      %s145 = sphi 0, %s145
      %s147 = sphi 0, %s145
      %s148 = sphi 0, %s147
      %s162 = sphi 0, %s148
      %s166 = sphi 0, %s166
      %s168 = sphi 0, %s166
      %s169 = sphi 0, %s168
      %s183 = sphi 0, %s169
      %s187 = sphi 0, %s187
      %s189 = sphi 0, %s187
      %s190 = sphi 0, %s189
      %s204 = sphi 0, %s190
      %s210 = sphi 0, %s212
      %s213 = sphi 0, %s210
      %s214 = sphi 0, %s213
      %s230 = sphi 0, %s214
    $region4: #{tpu_custom_call.1} parent=1 // loop_header_branch
      %20 = sbr.rel (%p18) target = $region8
    $region5: #{tpu_custom_call.1} parent=1 // loop_body
      %s22 = ssub.s32 %s17, 1
      %s23 = ssub.s32 %s17, 2
      %s24 = sadd.s32 %s17, 1
      %s25 = ssub.s32 %s17, %s24
      %p26 = scmp.eq.s32.totalorder %s25, 0
      %s28 = sadd.s32 %s27, 1
      %s29 = scalar_select %p26, %s27, %s28
      %p32 = pneg %p26
      %p33 = scmp.eq.s32.totalorder %s17, 1
      %p34 = por %p32, %p33
      %p35 = scmp.ne.s32.totalorder %s27, %s30
      %p36 = scmp.eq.s32.totalorder %s17, 0
      %p37 = por %p35, %p36
      %p38 = scmp.ne.s32.totalorder %s27, %s30
      %p39 = scmp.eq.s32.totalorder %s22, 1
      %p40 = por %p38, %p39
      %p41 = scmp.ne.s32.totalorder %s30, %s31
      %p42 = scmp.eq.s32.totalorder %s22, 0
      %p43 = por %p41, %p42
      %p44 = scmp.ne.s32.totalorder %s30, %s31
      %p45 = scmp.eq.s32.totalorder %s23, 1
      %p46 = por %p44, %p45
      %p48 = scmp.ne.s32.totalorder %s31, %s47
      %p49 = scmp.eq.s32.totalorder %s23, 0
      %p50 = por %p48, %p49
      %s51 = ssub.s32 %s17, %s24
      %p52 = scmp.eq.s32.totalorder %s51, 0
      %s54 = sadd.s32 %s53, 1
      %s55 = scalar_select %p52, %s53, %s54
      %p58 = pneg %p52
      %p59 = scmp.eq.s32.totalorder %s17, 1
      %p60 = por %p58, %p59
      %p61 = scmp.ne.s32.totalorder %s53, %s56
      %p62 = scmp.eq.s32.totalorder %s17, 0
      %p63 = por %p61, %p62
      %p64 = scmp.ne.s32.totalorder %s53, %s56
      %p65 = scmp.eq.s32.totalorder %s22, 1
      %p66 = por %p64, %p65
      %p67 = scmp.ne.s32.totalorder %s56, %s57
      %p68 = scmp.eq.s32.totalorder %s22, 0
      %p69 = por %p67, %p68
      %p70 = scmp.ne.s32.totalorder %s56, %s57
      %p71 = scmp.eq.s32.totalorder %s23, 1
      %p72 = por %p70, %p71
      %p74 = scmp.ne.s32.totalorder %s57, %s73
      %p75 = scmp.eq.s32.totalorder %s23, 0
      %p76 = por %p74, %p75
      %s77 = ssub.s32 %s17, %s24
      %p78 = scmp.eq.s32.totalorder %s77, 0
      %s80 = sadd.s32 %s79, 1
      %s81 = scalar_select %p78, %s79, %s80
      %p84 = pneg %p78
      %p85 = scmp.eq.s32.totalorder %s17, 1
      %p86 = por %p84, %p85
      %p87 = scmp.ne.s32.totalorder %s79, %s82
      %p88 = scmp.eq.s32.totalorder %s17, 0
      %p89 = por %p87, %p88
      %p90 = scmp.ne.s32.totalorder %s79, %s82
      %p91 = scmp.eq.s32.totalorder %s22, 1
      %p92 = por %p90, %p91
      %p93 = scmp.ne.s32.totalorder %s82, %s83
      %p94 = scmp.eq.s32.totalorder %s22, 0
      %p95 = por %p93, %p94
      %p96 = scmp.ne.s32.totalorder %s82, %s83
      %p97 = scmp.eq.s32.totalorder %s23, 1
      %p98 = por %p96, %p97
      %p100 = scmp.ne.s32.totalorder %s83, %s99
      %p101 = scmp.eq.s32.totalorder %s23, 0
      %p102 = por %p100, %p101
      %s104 = sadd.s32 %s103, 1
      %p107 = scmp.eq.s32.totalorder %s17, 1
      %p108 = scmp.ne.s32.totalorder %s103, %s105
      %p109 = scmp.eq.s32.totalorder %s17, 0
      %p110 = por %p108, %p109
      %p111 = scmp.ne.s32.totalorder %s103, %s105
      %p112 = scmp.eq.s32.totalorder %s22, 1
      %p113 = por %p111, %p112
      %p114 = scmp.ne.s32.totalorder %s105, %s106
      %p115 = scmp.eq.s32.totalorder %s22, 0
      %p116 = por %p114, %p115
      %p117 = scmp.ne.s32.totalorder %s105, %s106
      %p118 = scmp.eq.s32.totalorder %s23, 1
      %p119 = por %p117, %p118
      %p121 = scmp.ne.s32.totalorder %s106, %s120
      %p122 = scmp.eq.s32.totalorder %s23, 0
      %p123 = por %p121, %p122
      %s125 = sadd.s32 %s124, 1
      %p128 = scmp.eq.s32.totalorder %s17, 1
      %p129 = scmp.ne.s32.totalorder %s124, %s126
      %p130 = scmp.eq.s32.totalorder %s17, 0
      %p131 = por %p129, %p130
      %p132 = scmp.ne.s32.totalorder %s124, %s126
      %p133 = scmp.eq.s32.totalorder %s22, 1
      %p134 = por %p132, %p133
      %p135 = scmp.ne.s32.totalorder %s126, %s127
      %p136 = scmp.eq.s32.totalorder %s22, 0
      %p137 = por %p135, %p136
      %p138 = scmp.ne.s32.totalorder %s126, %s127
      %p139 = scmp.eq.s32.totalorder %s23, 1
      %p140 = por %p138, %p139
      %p142 = scmp.ne.s32.totalorder %s127, %s141
      %p143 = scmp.eq.s32.totalorder %s23, 0
      %p144 = por %p142, %p143
      %s146 = sadd.s32 %s145, 1
      %p149 = scmp.eq.s32.totalorder %s17, 1
      %p150 = scmp.ne.s32.totalorder %s145, %s147
      %p151 = scmp.eq.s32.totalorder %s17, 0
      %p152 = por %p150, %p151
      %p153 = scmp.ne.s32.totalorder %s145, %s147
      %p154 = scmp.eq.s32.totalorder %s22, 1
      %p155 = por %p153, %p154
      %p156 = scmp.ne.s32.totalorder %s147, %s148
      %p157 = scmp.eq.s32.totalorder %s22, 0
      %p158 = por %p156, %p157
      %p159 = scmp.ne.s32.totalorder %s147, %s148
      %p160 = scmp.eq.s32.totalorder %s23, 1
      %p161 = por %p159, %p160
      %p163 = scmp.ne.s32.totalorder %s148, %s162
      %p164 = scmp.eq.s32.totalorder %s23, 0
      %p165 = por %p163, %p164
      %s167 = sadd.s32 %s166, 1
      %p170 = scmp.eq.s32.totalorder %s17, 1
      %p171 = scmp.ne.s32.totalorder %s166, %s168
      %p172 = scmp.eq.s32.totalorder %s17, 0
      %p173 = por %p171, %p172
      %p174 = scmp.ne.s32.totalorder %s166, %s168
      %p175 = scmp.eq.s32.totalorder %s22, 1
      %p176 = por %p174, %p175
      %p177 = scmp.ne.s32.totalorder %s168, %s169
      %p178 = scmp.eq.s32.totalorder %s22, 0
      %p179 = por %p177, %p178
      %p180 = scmp.ne.s32.totalorder %s168, %s169
      %p181 = scmp.eq.s32.totalorder %s23, 1
      %p182 = por %p180, %p181
      %p184 = scmp.ne.s32.totalorder %s169, %s183
      %p185 = scmp.eq.s32.totalorder %s23, 0
      %p186 = por %p184, %p185
      %s188 = sadd.s32 %s187, 1
      %p191 = scmp.eq.s32.totalorder %s17, 1
      %p192 = scmp.ne.s32.totalorder %s187, %s189
      %p193 = scmp.eq.s32.totalorder %s17, 0
      %p194 = por %p192, %p193
      %p195 = scmp.ne.s32.totalorder %s187, %s189
      %p196 = scmp.eq.s32.totalorder %s22, 1
      %p197 = por %p195, %p196
      %p198 = scmp.ne.s32.totalorder %s189, %s190
      %p199 = scmp.eq.s32.totalorder %s22, 0
      %p200 = por %p198, %p199
      %p201 = scmp.ne.s32.totalorder %s189, %s190
      %p202 = scmp.eq.s32.totalorder %s23, 1
      %p203 = por %p201, %p202
      %p205 = scmp.ne.s32.totalorder %s190, %s204
      %p206 = scmp.eq.s32.totalorder %s23, 0
      %p207 = por %p205, %p206
      %s208 = ssub.s32 %s17, %s24
      %p209 = scmp.eq.s32.totalorder %s208, 0
      %s211 = sadd.s32 %s210, 1
      %s212 = scalar_select %p209, %s210, %s211
      %p215 = pneg %p209
      %p216 = scmp.eq.s32.totalorder %s17, 1
      %p217 = por %p215, %p216
      %p218 = scmp.ne.s32.totalorder %s210, %s213
      %p219 = scmp.eq.s32.totalorder %s17, 0
      %p220 = por %p218, %p219
      %p221 = scmp.ne.s32.totalorder %s210, %s213
      %p222 = scmp.eq.s32.totalorder %s22, 1
      %p223 = por %p221, %p222
      %p224 = scmp.ne.s32.totalorder %s213, %s214
      %p225 = scmp.eq.s32.totalorder %s22, 0
      %p226 = por %p224, %p225
      %p227 = scmp.ne.s32.totalorder %s213, %s214
      %p228 = scmp.eq.s32.totalorder %s23, 1
      %p229 = por %p227, %p228
      %p231 = scmp.ne.s32.totalorder %s214, %s230
      %p232 = scmp.eq.s32.totalorder %s23, 0
      %p233 = por %p231, %p232
      %p234 = scmp.le.s32.totalorder 1, %s17
      %p235 = scmp.lt.s32.totalorder %s17, 3
      %p236 = pnand %p234, %p235
      %p237 = pneg %p236
      // Predicated region
      $region9: #{tpu_custom_call.1} parent=5 // pred_check
        _
      $region10: #{tpu_custom_call.1} parent=5 // pred_check_branch
        %239 = sbr.rel (%p236) target = $region12
      $region11: #{tpu_custom_call.1} parent=5 // pred_region
        %s240 = ssub.s32 %s17, 1
        // Predicated region
        $region13: #{tpu_custom_call.1} parent=11 // pred_check
          %p241 = pneg %p116
        $region14: #{tpu_custom_call.1} parent=11 // pred_check_branch
          %243 = sbr.rel (%p241) target = $region16
        $region15: #{tpu_custom_call.1} parent=11 // pred_region
          _
        $region16: #{tpu_custom_call.1} parent=11 // pred_fallthru
          _
        // Predicated region
        $region17: #{tpu_custom_call.1} parent=11 // pred_check
          %p244 = pneg %p137
        $region18: #{tpu_custom_call.1} parent=11 // pred_check_branch
          %246 = sbr.rel (%p244) target = $region20
        $region19: #{tpu_custom_call.1} parent=11 // pred_region
          _
        $region20: #{tpu_custom_call.1} parent=11 // pred_fallthru
          _
        // Predicated region
        $region21: #{tpu_custom_call.1} parent=11 // pred_check
          %p247 = pneg %p158
        $region22: #{tpu_custom_call.1} parent=11 // pred_check_branch
          %249 = sbr.rel (%p247) target = $region24
        $region23: #{tpu_custom_call.1} parent=11 // pred_region
          _
        $region24: #{tpu_custom_call.1} parent=11 // pred_fallthru
          _
        // Predicated region
        $region25: #{tpu_custom_call.1} parent=11 // pred_check
          %p250 = pneg %p179
        $region26: #{tpu_custom_call.1} parent=11 // pred_check_branch
          %252 = sbr.rel (%p250) target = $region28
        $region27: #{tpu_custom_call.1} parent=11 // pred_region
          _
        $region28: #{tpu_custom_call.1} parent=11 // pred_fallthru
          _
        // Predicated region
        $region29: #{tpu_custom_call.1} parent=11 // pred_check
          %p253 = pneg %p200
        $region30: #{tpu_custom_call.1} parent=11 // pred_check_branch
          %255 = sbr.rel (%p253) target = $region32
        $region31: #{tpu_custom_call.1} parent=11 // pred_region
          _
        $region32: #{tpu_custom_call.1} parent=11 // pred_fallthru
          _
      $region12: #{tpu_custom_call.1} parent=5 // pred_fallthru
        _
      %p256 = scmp.lt.s32.totalorder %s17, 2
      // Predicated region
      $region33: #{tpu_custom_call.1} parent=5 // pred_check
        %p257 = pneg %p256
      $region34: #{tpu_custom_call.1} parent=5 // pred_check_branch
        %259 = sbr.rel (%p257) target = $region36
      $region35: #{tpu_custom_call.1} parent=5 // pred_region
        // Predicated region
        $region37: #{tpu_custom_call.1} parent=35 // pred_check
          %p260 = pneg %p37
        $region38: #{tpu_custom_call.1} parent=35 // pred_check_branch
          %262 = sbr.rel (%p260) target = $region40
        $region39: #{tpu_custom_call.1} parent=35 // pred_region
          %s263 = smul.u32 16, %s17
          %p264 = scmp.lt.s32.totalorder %s263, 31
          %s265 = scalar_select %p264, %s263, 31
          %s266 = smul.addr %s265, 8
          %s267 = scalar_lea.vmem %s0, %s266
          %s268 = smul.u32 16, %s17
        $region40: #{tpu_custom_call.1} parent=35 // pred_fallthru
          _
        // Predicated region
        $region41: #{tpu_custom_call.1} parent=35 // pred_check
          %p269 = pneg %p63
        $region42: #{tpu_custom_call.1} parent=35 // pred_check_branch
          %271 = sbr.rel (%p269) target = $region44
        $region43: #{tpu_custom_call.1} parent=35 // pred_region
          %s272 = smul.u32 64, %s17
          %p273 = scmp.lt.s32.totalorder %s272, 127
          %s274 = scalar_select %p273, %s272, 127
          %s275 = smul.addr %s274, 8
          %s276 = scalar_lea.vmem %s1, %s275
          %s277 = smul.u32 64, %s17
        $region44: #{tpu_custom_call.1} parent=35 // pred_fallthru
          _
        // Predicated region
        $region45: #{tpu_custom_call.1} parent=35 // pred_check
          %p278 = pneg %p89
        $region46: #{tpu_custom_call.1} parent=35 // pred_check_branch
          %280 = sbr.rel (%p278) target = $region48
        $region47: #{tpu_custom_call.1} parent=35 // pred_region
          %s281 = smul.u32 64, %s17
          %p282 = scmp.lt.s32.totalorder %s281, 127
          %s283 = scalar_select %p282, %s281, 127
          %s284 = smul.addr %s283, 4
          %s285 = scalar_lea.vmem %s2, %s284
          %s286 = smul.u32 64, %s17
        $region48: #{tpu_custom_call.1} parent=35 // pred_fallthru
          _
      $region36: #{tpu_custom_call.1} parent=5 // pred_fallthru
        _
      %p287 = scmp.le.s32.totalorder 1, %s17
      %p288 = scmp.lt.s32.totalorder %s17, 3
      %p289 = pnand %p287, %p288
      %p290 = pneg %p289
      // Predicated region
      $region49: #{tpu_custom_call.1} parent=5 // pred_check
        _
      $region50: #{tpu_custom_call.1} parent=5 // pred_check_branch
        %292 = sbr.rel (%p289) target = $region52
      $region51: #{tpu_custom_call.1} parent=5 // pred_region
        %s293 = ssub.s32 %s17, 1
        %s294 = smul.u32 16, %s22
        %p295 = scmp.lt.s32.totalorder %s294, 31
        %s296 = scalar_select %p295, %s294, 31
        %s297 = smul.addr %s296, 8
        %s298 = scalar_lea.vmem %s0, %s297
        %p299 = pneg %p43
        %p300 = pneg %p40
        %s301 = smul.u32 64, %s22
        %p302 = scmp.lt.s32.totalorder %s301, 127
        %s303 = scalar_select %p302, %s301, 127
        %s304 = smul.addr %s303, 8
        %s305 = scalar_lea.vmem %s1, %s304
        %p306 = pneg %p69
        %p307 = pneg %p66
        %s308 = smul.u32 64, %s22
        %p309 = scmp.lt.s32.totalorder %s308, 127
        %s310 = scalar_select %p309, %s308, 127
        %s311 = smul.addr %s310, 4
        %s312 = scalar_lea.vmem %s2, %s311
        %p313 = pneg %p95
        %p314 = pneg %p92
        %p315 = pneg %p116
        %p316 = pneg %p113
        %p317 = pneg %p137
        %p318 = pneg %p134
        %p319 = pneg %p158
        %p320 = pneg %p155
        %p321 = pneg %p179
        %p322 = pneg %p176
        %p323 = pneg %p200
        %p324 = pneg %p197
        %p325 = pneg %p226
        %p326 = pneg %p223
        %s327 = sand.u32 %s213, 1
        %s328 = scalar_lea.sflag [#allocation3], %s327
        %s329 = sand.u32 %s213, 1
        %s330 = smul.addr %s329, 128
        %s331 = scalar_lea.vmem [#allocation2], %s330
        %s332 = smul.u32 16, %s22
        %p333 = scmp.lt.s32.totalorder %s332, 31
        %s334 = scalar_select %p333, %s332, 31
        %s335 = smul.addr %s334, 8
        %s336 = scalar_lea.vmem %s0, %s335
        %s337 = smul.u32 16, %s22
        %s338 = smul.u32 64, %s22
        %p339 = scmp.lt.s32.totalorder %s338, 127
        %s340 = scalar_select %p339, %s338, 127
        %s341 = smul.addr %s340, 8
        %s342 = scalar_lea.vmem %s1, %s341
        %s343 = smul.u32 64, %s22
        %s344 = smul.u32 64, %s22
        %p345 = scmp.lt.s32.totalorder %s344, 127
        %s346 = scalar_select %p345, %s344, 127
        %s347 = smul.addr %s346, 4
        %s348 = scalar_lea.vmem %s2, %s347
        %s349 = smul.u32 64, %s22
        %s350 = smul.u32 16, %s22
        %v352 = vld [vmem:[%s336] sm:$0xff]
        %v353 = vld [vmem:[%s336 + $0x8] sm:$0xff]
        %v354 = vld [vmem:[%s336 + $0x10] sm:$0xff]
        %v355 = vld [vmem:[%s336 + $0x18] sm:$0xff]
        %v356 = vld [vmem:[%s336 + $0x20] sm:$0xff]
        %v357 = vld [vmem:[%s336 + $0x28] sm:$0xff]
        %v358 = vld [vmem:[%s336 + $0x30] sm:$0xff]
        %v359 = vld [vmem:[%s336 + $0x38] sm:$0xff]
        %v360 = vld [vmem:[%s336 + $0x40] sm:$0xff]
        %v361 = vld [vmem:[%s336 + $0x48] sm:$0xff]
        %v362 = vld [vmem:[%s336 + $0x50] sm:$0xff]
        %v363 = vld [vmem:[%s336 + $0x58] sm:$0xff]
        %v364 = vld [vmem:[%s336 + $0x60] sm:$0xff]
        %v365 = vld [vmem:[%s336 + $0x68] sm:$0xff]
        %v366 = vld [vmem:[%s336 + $0x70] sm:$0xff]
        %v367 = vld [vmem:[%s336 + $0x78] sm:$0xff]
        %v368 = vld [vmem:[%s342] sm:$0xff]
        %v369 = vld [vmem:[%s342 + $0x8] sm:$0xff]
        %v370 = vld [vmem:[%s342 + $0x10] sm:$0xff]
        %v371 = vld [vmem:[%s342 + $0x18] sm:$0xff]
        %v372 = vld [vmem:[%s342 + $0x20] sm:$0xff]
        %v373 = vld [vmem:[%s342 + $0x28] sm:$0xff]
        %v374 = vld [vmem:[%s342 + $0x30] sm:$0xff]
        %v375 = vld [vmem:[%s342 + $0x38] sm:$0xff]
        %v376 = vld [vmem:[%s342 + $0x40] sm:$0xff]
        %v377 = vld [vmem:[%s342 + $0x48] sm:$0xff]
        %v378 = vld [vmem:[%s342 + $0x50] sm:$0xff]
        %v379 = vld [vmem:[%s342 + $0x58] sm:$0xff]
        %v380 = vld [vmem:[%s342 + $0x60] sm:$0xff]
        %v381 = vld [vmem:[%s342 + $0x68] sm:$0xff]
        %v382 = vld [vmem:[%s342 + $0x70] sm:$0xff]
        %v383 = vld [vmem:[%s342 + $0x78] sm:$0xff]
        %v384 = vld [vmem:[%s342 + $0x80] sm:$0xff]
        %v385 = vld [vmem:[%s342 + $0x88] sm:$0xff]
        %v386 = vld [vmem:[%s342 + $0x90] sm:$0xff]
        %v387 = vld [vmem:[%s342 + $0x98] sm:$0xff]
        %v388 = vld [vmem:[%s342 + $0xa0] sm:$0xff]
        %v389 = vld [vmem:[%s342 + $0xa8] sm:$0xff]
        %v390 = vld [vmem:[%s342 + $0xb0] sm:$0xff]
        %v391 = vld [vmem:[%s342 + $0xb8] sm:$0xff]
        %v392 = vld [vmem:[%s342 + $0xc0] sm:$0xff]
        %v393 = vld [vmem:[%s342 + $0xc8] sm:$0xff]
        %v394 = vld [vmem:[%s342 + $0xd0] sm:$0xff]
        %v395 = vld [vmem:[%s342 + $0xd8] sm:$0xff]
        %v396 = vld [vmem:[%s342 + $0xe0] sm:$0xff]
        %v397 = vld [vmem:[%s342 + $0xe8] sm:$0xff]
        %v398 = vld [vmem:[%s342 + $0xf0] sm:$0xff]
        %v399 = vld [vmem:[%s342 + $0xf8] sm:$0xff]
        %v400 = vld [vmem:[%s342 + $0x100] sm:$0xff]
        %v401 = vld [vmem:[%s342 + $0x108] sm:$0xff]
        %v402 = vld [vmem:[%s342 + $0x110] sm:$0xff]
        %v403 = vld [vmem:[%s342 + $0x118] sm:$0xff]
        %v404 = vld [vmem:[%s342 + $0x120] sm:$0xff]
        %v405 = vld [vmem:[%s342 + $0x128] sm:$0xff]
        %v406 = vld [vmem:[%s342 + $0x130] sm:$0xff]
        %v407 = vld [vmem:[%s342 + $0x138] sm:$0xff]
        %v408 = vld [vmem:[%s342 + $0x140] sm:$0xff]
        %v409 = vld [vmem:[%s342 + $0x148] sm:$0xff]
        %v410 = vld [vmem:[%s342 + $0x150] sm:$0xff]
        %v411 = vld [vmem:[%s342 + $0x158] sm:$0xff]
        %v412 = vld [vmem:[%s342 + $0x160] sm:$0xff]
        %v413 = vld [vmem:[%s342 + $0x168] sm:$0xff]
        %v414 = vld [vmem:[%s342 + $0x170] sm:$0xff]
        %v415 = vld [vmem:[%s342 + $0x178] sm:$0xff]
        %v416 = vld [vmem:[%s342 + $0x180] sm:$0xff]
        %v417 = vld [vmem:[%s342 + $0x188] sm:$0xff]
        %v418 = vld [vmem:[%s342 + $0x190] sm:$0xff]
        %v419 = vld [vmem:[%s342 + $0x198] sm:$0xff]
        %v420 = vld [vmem:[%s342 + $0x1a0] sm:$0xff]
        %v421 = vld [vmem:[%s342 + $0x1a8] sm:$0xff]
        %v422 = vld [vmem:[%s342 + $0x1b0] sm:$0xff]
        %v423 = vld [vmem:[%s342 + $0x1b8] sm:$0xff]
        %v424 = vld [vmem:[%s342 + $0x1c0] sm:$0xff]
        %v425 = vld [vmem:[%s342 + $0x1c8] sm:$0xff]
        %v426 = vld [vmem:[%s342 + $0x1d0] sm:$0xff]
        %v427 = vld [vmem:[%s342 + $0x1d8] sm:$0xff]
        %v428 = vld [vmem:[%s342 + $0x1e0] sm:$0xff]
        %v429 = vld [vmem:[%s342 + $0x1e8] sm:$0xff]
        %v430 = vld [vmem:[%s342 + $0x1f0] sm:$0xff]
        %v431 = vld [vmem:[%s342 + $0x1f8] sm:$0xff]
        %v432 = vlaneseq
        %v433 = vand.u32 %v432, 127
        %434 = vset.pattern.permute.xlu0 0
        %435 = vperm.xlu0 %434, %v368
        %v436 = vpop.permute.xlu0 %435
        %437 = vset.pattern.permute.xlu0 0
        %438 = vperm.xlu0 %437, %v369
        %v439 = vpop.permute.xlu0 %438
        %440 = vset.pattern.permute.xlu0 0
        %441 = vperm.xlu0 %440, %v370
        %v442 = vpop.permute.xlu0 %441
        %443 = vset.pattern.permute.xlu0 0
        %444 = vperm.xlu0 %443, %v371
        %v445 = vpop.permute.xlu0 %444
        %446 = vset.pattern.permute.xlu0 0
        %447 = vperm.xlu0 %446, %v372
        %v448 = vpop.permute.xlu0 %447
        %449 = vset.pattern.permute.xlu0 0
        %450 = vperm.xlu0 %449, %v373
        %v451 = vpop.permute.xlu0 %450
        %452 = vset.pattern.permute.xlu0 0
        %453 = vperm.xlu0 %452, %v374
        %v454 = vpop.permute.xlu0 %453
        %455 = vset.pattern.permute.xlu0 0
        %456 = vperm.xlu0 %455, %v375
        %v457 = vpop.permute.xlu0 %456
        %458 = vset.pattern.permute.xlu0 0
        %459 = vperm.xlu0 %458, %v376
        %v460 = vpop.permute.xlu0 %459
        %461 = vset.pattern.permute.xlu0 0
        %462 = vperm.xlu0 %461, %v377
        %v463 = vpop.permute.xlu0 %462
        %464 = vset.pattern.permute.xlu0 0
        %465 = vperm.xlu0 %464, %v378
        %v466 = vpop.permute.xlu0 %465
        %467 = vset.pattern.permute.xlu0 0
        %468 = vperm.xlu0 %467, %v379
        %v469 = vpop.permute.xlu0 %468
        %470 = vset.pattern.permute.xlu0 0
        %471 = vperm.xlu0 %470, %v380
        %v472 = vpop.permute.xlu0 %471
        %473 = vset.pattern.permute.xlu0 0
        %474 = vperm.xlu0 %473, %v381
        %v475 = vpop.permute.xlu0 %474
        %476 = vset.pattern.permute.xlu0 0
        %477 = vperm.xlu0 %476, %v382
        %v478 = vpop.permute.xlu0 %477
        %479 = vset.pattern.permute.xlu0 0
        %480 = vperm.xlu0 %479, %v383
        %v481 = vpop.permute.xlu0 %480
        %482 = vset.pattern.permute.xlu0 0
        %483 = vperm.xlu0 %482, %v384
        %v484 = vpop.permute.xlu0 %483
        %485 = vset.pattern.permute.xlu0 0
        %486 = vperm.xlu0 %485, %v385
        %v487 = vpop.permute.xlu0 %486
        %488 = vset.pattern.permute.xlu0 0
        %489 = vperm.xlu0 %488, %v386
        %v490 = vpop.permute.xlu0 %489
        %491 = vset.pattern.permute.xlu0 0
        %492 = vperm.xlu0 %491, %v387
        %v493 = vpop.permute.xlu0 %492
        %494 = vset.pattern.permute.xlu0 0
        %495 = vperm.xlu0 %494, %v388
        %v496 = vpop.permute.xlu0 %495
        %497 = vset.pattern.permute.xlu0 0
        %498 = vperm.xlu0 %497, %v389
        %v499 = vpop.permute.xlu0 %498
        %500 = vset.pattern.permute.xlu0 0
        %501 = vperm.xlu0 %500, %v390
        %v502 = vpop.permute.xlu0 %501
        %503 = vset.pattern.permute.xlu0 0
        %504 = vperm.xlu0 %503, %v391
        %v505 = vpop.permute.xlu0 %504
        %506 = vset.pattern.permute.xlu0 0
        %507 = vperm.xlu0 %506, %v392
        %v508 = vpop.permute.xlu0 %507
        %509 = vset.pattern.permute.xlu0 0
        %510 = vperm.xlu0 %509, %v393
        %v511 = vpop.permute.xlu0 %510
        %512 = vset.pattern.permute.xlu0 0
        %513 = vperm.xlu0 %512, %v394
        %v514 = vpop.permute.xlu0 %513
        %515 = vset.pattern.permute.xlu0 0
        %516 = vperm.xlu0 %515, %v395
        %v517 = vpop.permute.xlu0 %516
        %518 = vset.pattern.permute.xlu0 0
        %519 = vperm.xlu0 %518, %v396
        %v520 = vpop.permute.xlu0 %519
        %521 = vset.pattern.permute.xlu0 0
        %522 = vperm.xlu0 %521, %v397
        %v523 = vpop.permute.xlu0 %522
        %524 = vset.pattern.permute.xlu0 0
        %525 = vperm.xlu0 %524, %v398
        %v526 = vpop.permute.xlu0 %525
        %527 = vset.pattern.permute.xlu0 0
        %528 = vperm.xlu0 %527, %v399
        %v529 = vpop.permute.xlu0 %528
        %530 = vset.pattern.permute.xlu0 0
        %531 = vperm.xlu0 %530, %v400
        %v532 = vpop.permute.xlu0 %531
        %533 = vset.pattern.permute.xlu0 0
        %534 = vperm.xlu0 %533, %v401
        %v535 = vpop.permute.xlu0 %534
        %536 = vset.pattern.permute.xlu0 0
        %537 = vperm.xlu0 %536, %v402
        %v538 = vpop.permute.xlu0 %537
        %539 = vset.pattern.permute.xlu0 0
        %540 = vperm.xlu0 %539, %v403
        %v541 = vpop.permute.xlu0 %540
        %542 = vset.pattern.permute.xlu0 0
        %543 = vperm.xlu0 %542, %v404
        %v544 = vpop.permute.xlu0 %543
        %545 = vset.pattern.permute.xlu0 0
        %546 = vperm.xlu0 %545, %v405
        %v547 = vpop.permute.xlu0 %546
        %548 = vset.pattern.permute.xlu0 0
        %549 = vperm.xlu0 %548, %v406
        %v550 = vpop.permute.xlu0 %549
        %551 = vset.pattern.permute.xlu0 0
        %552 = vperm.xlu0 %551, %v407
        %v553 = vpop.permute.xlu0 %552
        %554 = vset.pattern.permute.xlu0 0
        %555 = vperm.xlu0 %554, %v408
        %v556 = vpop.permute.xlu0 %555
        %557 = vset.pattern.permute.xlu0 0
        %558 = vperm.xlu0 %557, %v409
        %v559 = vpop.permute.xlu0 %558
        %560 = vset.pattern.permute.xlu0 0
        %561 = vperm.xlu0 %560, %v410
        %v562 = vpop.permute.xlu0 %561
        %563 = vset.pattern.permute.xlu0 0
        %564 = vperm.xlu0 %563, %v411
        %v565 = vpop.permute.xlu0 %564
        %566 = vset.pattern.permute.xlu0 0
        %567 = vperm.xlu0 %566, %v412
        %v568 = vpop.permute.xlu0 %567
        %569 = vset.pattern.permute.xlu0 0
        %570 = vperm.xlu0 %569, %v413
        %v571 = vpop.permute.xlu0 %570
        %572 = vset.pattern.permute.xlu0 0
        %573 = vperm.xlu0 %572, %v414
        %v574 = vpop.permute.xlu0 %573
        %575 = vset.pattern.permute.xlu0 0
        %576 = vperm.xlu0 %575, %v415
        %v577 = vpop.permute.xlu0 %576
        %578 = vset.pattern.permute.xlu0 0
        %579 = vperm.xlu0 %578, %v416
        %v580 = vpop.permute.xlu0 %579
        %581 = vset.pattern.permute.xlu0 0
        %582 = vperm.xlu0 %581, %v417
        %v583 = vpop.permute.xlu0 %582
        %584 = vset.pattern.permute.xlu0 0
        %585 = vperm.xlu0 %584, %v418
        %v586 = vpop.permute.xlu0 %585
        %587 = vset.pattern.permute.xlu0 0
        %588 = vperm.xlu0 %587, %v419
        %v589 = vpop.permute.xlu0 %588
        %590 = vset.pattern.permute.xlu0 0
        %591 = vperm.xlu0 %590, %v420
        %v592 = vpop.permute.xlu0 %591
        %593 = vset.pattern.permute.xlu0 0
        %594 = vperm.xlu0 %593, %v421
        %v595 = vpop.permute.xlu0 %594
        %596 = vset.pattern.permute.xlu0 0
        %597 = vperm.xlu0 %596, %v422
        %v598 = vpop.permute.xlu0 %597
        %599 = vset.pattern.permute.xlu0 0
        %600 = vperm.xlu0 %599, %v423
        %v601 = vpop.permute.xlu0 %600
        %602 = vset.pattern.permute.xlu0 0
        %603 = vperm.xlu0 %602, %v424
        %v604 = vpop.permute.xlu0 %603
        %605 = vset.pattern.permute.xlu0 0
        %606 = vperm.xlu0 %605, %v425
        %v607 = vpop.permute.xlu0 %606
        %608 = vset.pattern.permute.xlu0 0
        %609 = vperm.xlu0 %608, %v426
        %v610 = vpop.permute.xlu0 %609
        %611 = vset.pattern.permute.xlu0 0
        %612 = vperm.xlu0 %611, %v427
        %v613 = vpop.permute.xlu0 %612
        %614 = vset.pattern.permute.xlu0 0
        %615 = vperm.xlu0 %614, %v428
        %v616 = vpop.permute.xlu0 %615
        %617 = vset.pattern.permute.xlu0 0
        %618 = vperm.xlu0 %617, %v429
        %v619 = vpop.permute.xlu0 %618
        %620 = vset.pattern.permute.xlu0 0
        %621 = vperm.xlu0 %620, %v430
        %v622 = vpop.permute.xlu0 %621
        %623 = vset.pattern.permute.xlu0 0
        %624 = vperm.xlu0 %623, %v431
        %v625 = vpop.permute.xlu0 %624
        %vm626 = vcmp.eq.s32.totalorder %v436, %v433
        %vm627 = vcmp.eq.s32.totalorder %v439, %v433
        %vm628 = vcmp.eq.s32.totalorder %v442, %v433
        %vm629 = vcmp.eq.s32.totalorder %v445, %v433
        %vm630 = vcmp.eq.s32.totalorder %v448, %v433
        %vm631 = vcmp.eq.s32.totalorder %v451, %v433
        %vm632 = vcmp.eq.s32.totalorder %v454, %v433
        %vm633 = vcmp.eq.s32.totalorder %v457, %v433
        %vm634 = vcmp.eq.s32.totalorder %v460, %v433
        %vm635 = vcmp.eq.s32.totalorder %v463, %v433
        %vm636 = vcmp.eq.s32.totalorder %v466, %v433
        %vm637 = vcmp.eq.s32.totalorder %v469, %v433
        %vm638 = vcmp.eq.s32.totalorder %v472, %v433
        %vm639 = vcmp.eq.s32.totalorder %v475, %v433
        %vm640 = vcmp.eq.s32.totalorder %v478, %v433
        %vm641 = vcmp.eq.s32.totalorder %v481, %v433
        %vm642 = vcmp.eq.s32.totalorder %v484, %v433
        %vm643 = vcmp.eq.s32.totalorder %v487, %v433
        %vm644 = vcmp.eq.s32.totalorder %v490, %v433
        %vm645 = vcmp.eq.s32.totalorder %v493, %v433
        %vm646 = vcmp.eq.s32.totalorder %v496, %v433
        %vm647 = vcmp.eq.s32.totalorder %v499, %v433
        %vm648 = vcmp.eq.s32.totalorder %v502, %v433
        %vm649 = vcmp.eq.s32.totalorder %v505, %v433
        %vm650 = vcmp.eq.s32.totalorder %v508, %v433
        %vm651 = vcmp.eq.s32.totalorder %v511, %v433
        %vm652 = vcmp.eq.s32.totalorder %v514, %v433
        %vm653 = vcmp.eq.s32.totalorder %v517, %v433
        %vm654 = vcmp.eq.s32.totalorder %v520, %v433
        %vm655 = vcmp.eq.s32.totalorder %v523, %v433
        %vm656 = vcmp.eq.s32.totalorder %v526, %v433
        %vm657 = vcmp.eq.s32.totalorder %v529, %v433
        %vm658 = vcmp.eq.s32.totalorder %v532, %v433
        %vm659 = vcmp.eq.s32.totalorder %v535, %v433
        %vm660 = vcmp.eq.s32.totalorder %v538, %v433
        %vm661 = vcmp.eq.s32.totalorder %v541, %v433
        %vm662 = vcmp.eq.s32.totalorder %v544, %v433
        %vm663 = vcmp.eq.s32.totalorder %v547, %v433
        %vm664 = vcmp.eq.s32.totalorder %v550, %v433
        %vm665 = vcmp.eq.s32.totalorder %v553, %v433
        %vm666 = vcmp.eq.s32.totalorder %v556, %v433
        %vm667 = vcmp.eq.s32.totalorder %v559, %v433
        %vm668 = vcmp.eq.s32.totalorder %v562, %v433
        %vm669 = vcmp.eq.s32.totalorder %v565, %v433
        %vm670 = vcmp.eq.s32.totalorder %v568, %v433
        %vm671 = vcmp.eq.s32.totalorder %v571, %v433
        %vm672 = vcmp.eq.s32.totalorder %v574, %v433
        %vm673 = vcmp.eq.s32.totalorder %v577, %v433
        %vm674 = vcmp.eq.s32.totalorder %v580, %v433
        %vm675 = vcmp.eq.s32.totalorder %v583, %v433
        %vm676 = vcmp.eq.s32.totalorder %v586, %v433
        %vm677 = vcmp.eq.s32.totalorder %v589, %v433
        %vm678 = vcmp.eq.s32.totalorder %v592, %v433
        %vm679 = vcmp.eq.s32.totalorder %v595, %v433
        %vm680 = vcmp.eq.s32.totalorder %v598, %v433
        %vm681 = vcmp.eq.s32.totalorder %v601, %v433
        %vm682 = vcmp.eq.s32.totalorder %v604, %v433
        %vm683 = vcmp.eq.s32.totalorder %v607, %v433
        %vm684 = vcmp.eq.s32.totalorder %v610, %v433
        %vm685 = vcmp.eq.s32.totalorder %v613, %v433
        %vm686 = vcmp.eq.s32.totalorder %v616, %v433
        %vm687 = vcmp.eq.s32.totalorder %v619, %v433
        %vm688 = vcmp.eq.s32.totalorder %v622, %v433
        %vm689 = vcmp.eq.s32.totalorder %v625, %v433
        %v690 = vsel %vm626, 1, 0
        %v691 = vsel %vm627, 1, 0
        %v692 = vsel %vm628, 1, 0
        %v693 = vsel %vm629, 1, 0
        %v694 = vsel %vm630, 1, 0
        %v695 = vsel %vm631, 1, 0
        %v696 = vsel %vm632, 1, 0
        %v697 = vsel %vm633, 1, 0
        %v698 = vsel %vm634, 1, 0
        %v699 = vsel %vm635, 1, 0
        %v700 = vsel %vm636, 1, 0
        %v701 = vsel %vm637, 1, 0
        %v702 = vsel %vm638, 1, 0
        %v703 = vsel %vm639, 1, 0
        %v704 = vsel %vm640, 1, 0
        %v705 = vsel %vm641, 1, 0
        %v706 = vsel %vm642, 1, 0
        %v707 = vsel %vm643, 1, 0
        %v708 = vsel %vm644, 1, 0
        %v709 = vsel %vm645, 1, 0
        %v710 = vsel %vm646, 1, 0
        %v711 = vsel %vm647, 1, 0
        %v712 = vsel %vm648, 1, 0
        %v713 = vsel %vm649, 1, 0
        %v714 = vsel %vm650, 1, 0
        %v715 = vsel %vm651, 1, 0
        %v716 = vsel %vm652, 1, 0
        %v717 = vsel %vm653, 1, 0
        %v718 = vsel %vm654, 1, 0
        %v719 = vsel %vm655, 1, 0
        %v720 = vsel %vm656, 1, 0
        %v721 = vsel %vm657, 1, 0
        %v722 = vsel %vm658, 1, 0
        %v723 = vsel %vm659, 1, 0
        %v724 = vsel %vm660, 1, 0
        %v725 = vsel %vm661, 1, 0
        %v726 = vsel %vm662, 1, 0
        %v727 = vsel %vm663, 1, 0
        %v728 = vsel %vm664, 1, 0
        %v729 = vsel %vm665, 1, 0
        %v730 = vsel %vm666, 1, 0
        %v731 = vsel %vm667, 1, 0
        %v732 = vsel %vm668, 1, 0
        %v733 = vsel %vm669, 1, 0
        %v734 = vsel %vm670, 1, 0
        %v735 = vsel %vm671, 1, 0
        %v736 = vsel %vm672, 1, 0
        %v737 = vsel %vm673, 1, 0
        %v738 = vsel %vm674, 1, 0
        %v739 = vsel %vm675, 1, 0
        %v740 = vsel %vm676, 1, 0
        %v741 = vsel %vm677, 1, 0
        %v742 = vsel %vm678, 1, 0
        %v743 = vsel %vm679, 1, 0
        %v744 = vsel %vm680, 1, 0
        %v745 = vsel %vm681, 1, 0
        %v746 = vsel %vm682, 1, 0
        %v747 = vsel %vm683, 1, 0
        %v748 = vsel %vm684, 1, 0
        %v749 = vsel %vm685, 1, 0
        %v750 = vsel %vm686, 1, 0
        %v751 = vsel %vm687, 1, 0
        %v752 = vsel %vm688, 1, 0
        %v753 = vsel %vm689, 1, 0
        %v754 = vcvt.s32.f32 %v690
        %v755 = vcvt.s32.f32 %v691
        %v756 = vcvt.s32.f32 %v692
        %v757 = vcvt.s32.f32 %v693
        %v758 = vcvt.s32.f32 %v694
        %v759 = vcvt.s32.f32 %v695
        %v760 = vcvt.s32.f32 %v696
        %v761 = vcvt.s32.f32 %v697
        %v762 = vcvt.s32.f32 %v698
        %v763 = vcvt.s32.f32 %v699
        %v764 = vcvt.s32.f32 %v700
        %v765 = vcvt.s32.f32 %v701
        %v766 = vcvt.s32.f32 %v702
        %v767 = vcvt.s32.f32 %v703
        %v768 = vcvt.s32.f32 %v704
        %v769 = vcvt.s32.f32 %v705
        %v770 = vcvt.s32.f32 %v706
        %v771 = vcvt.s32.f32 %v707
        %v772 = vcvt.s32.f32 %v708
        %v773 = vcvt.s32.f32 %v709
        %v774 = vcvt.s32.f32 %v710
        %v775 = vcvt.s32.f32 %v711
        %v776 = vcvt.s32.f32 %v712
        %v777 = vcvt.s32.f32 %v713
        %v778 = vcvt.s32.f32 %v714
        %v779 = vcvt.s32.f32 %v715
        %v780 = vcvt.s32.f32 %v716
        %v781 = vcvt.s32.f32 %v717
        %v782 = vcvt.s32.f32 %v718
        %v783 = vcvt.s32.f32 %v719
        %v784 = vcvt.s32.f32 %v720
        %v785 = vcvt.s32.f32 %v721
        %v786 = vcvt.s32.f32 %v722
        %v787 = vcvt.s32.f32 %v723
        %v788 = vcvt.s32.f32 %v724
        %v789 = vcvt.s32.f32 %v725
        %v790 = vcvt.s32.f32 %v726
        %v791 = vcvt.s32.f32 %v727
        %v792 = vcvt.s32.f32 %v728
        %v793 = vcvt.s32.f32 %v729
        %v794 = vcvt.s32.f32 %v730
        %v795 = vcvt.s32.f32 %v731
        %v796 = vcvt.s32.f32 %v732
        %v797 = vcvt.s32.f32 %v733
        %v798 = vcvt.s32.f32 %v734
        %v799 = vcvt.s32.f32 %v735
        %v800 = vcvt.s32.f32 %v736
        %v801 = vcvt.s32.f32 %v737
        %v802 = vcvt.s32.f32 %v738
        %v803 = vcvt.s32.f32 %v739
        %v804 = vcvt.s32.f32 %v740
        %v805 = vcvt.s32.f32 %v741
        %v806 = vcvt.s32.f32 %v742
        %v807 = vcvt.s32.f32 %v743
        %v808 = vcvt.s32.f32 %v744
        %v809 = vcvt.s32.f32 %v745
        %v810 = vcvt.s32.f32 %v746
        %v811 = vcvt.s32.f32 %v747
        %v812 = vcvt.s32.f32 %v748
        %v813 = vcvt.s32.f32 %v749
        %v814 = vcvt.s32.f32 %v750
        %v815 = vcvt.s32.f32 %v751
        %v816 = vcvt.s32.f32 %v752
        %v817 = vcvt.s32.f32 %v753
        %v818 = vpack.c.bf16 %v755, %v754
        %v819 = vpack.c.bf16 %v757, %v756
        %v820 = vpack.c.bf16 %v759, %v758
        %v821 = vpack.c.bf16 %v761, %v760
        %v822 = vpack.c.bf16 %v763, %v762
        %v823 = vpack.c.bf16 %v765, %v764
        %v824 = vpack.c.bf16 %v767, %v766
        %v825 = vpack.c.bf16 %v769, %v768
        %v826 = vpack.c.bf16 %v771, %v770
        %v827 = vpack.c.bf16 %v773, %v772
        %v828 = vpack.c.bf16 %v775, %v774
        %v829 = vpack.c.bf16 %v777, %v776
        %v830 = vpack.c.bf16 %v779, %v778
        %v831 = vpack.c.bf16 %v781, %v780
        %v832 = vpack.c.bf16 %v783, %v782
        %v833 = vpack.c.bf16 %v785, %v784
        %v834 = vpack.c.bf16 %v787, %v786
        %v835 = vpack.c.bf16 %v789, %v788
        %v836 = vpack.c.bf16 %v791, %v790
        %v837 = vpack.c.bf16 %v793, %v792
        %v838 = vpack.c.bf16 %v795, %v794
        %v839 = vpack.c.bf16 %v797, %v796
        %v840 = vpack.c.bf16 %v799, %v798
        %v841 = vpack.c.bf16 %v801, %v800
        %v842 = vpack.c.bf16 %v803, %v802
        %v843 = vpack.c.bf16 %v805, %v804
        %v844 = vpack.c.bf16 %v807, %v806
        %v845 = vpack.c.bf16 %v809, %v808
        %v846 = vpack.c.bf16 %v811, %v810
        %v847 = vpack.c.bf16 %v813, %v812
        %v848 = vpack.c.bf16 %v815, %v814
        %v849 = vpack.c.bf16 %v817, %v816
        %v850 = vld [vmem:[%s348] sm:$0xf]
        %v851 = vld [vmem:[%s348 + $0x4] sm:$0xf]
        %v852 = vld [vmem:[%s348 + $0x8] sm:$0xf]
        %v853 = vld [vmem:[%s348 + $0xc] sm:$0xf]
        %v854 = vld [vmem:[%s348 + $0x10] sm:$0xf]
        %v855 = vld [vmem:[%s348 + $0x14] sm:$0xf]
        %v856 = vld [vmem:[%s348 + $0x18] sm:$0xf]
        %v857 = vld [vmem:[%s348 + $0x1c] sm:$0xf]
        %v858 = vld [vmem:[%s348 + $0x20] sm:$0xf]
        %v859 = vld [vmem:[%s348 + $0x24] sm:$0xf]
        %v860 = vld [vmem:[%s348 + $0x28] sm:$0xf]
        %v861 = vld [vmem:[%s348 + $0x2c] sm:$0xf]
        %v862 = vld [vmem:[%s348 + $0x30] sm:$0xf]
        %v863 = vld [vmem:[%s348 + $0x34] sm:$0xf]
        %v864 = vld [vmem:[%s348 + $0x38] sm:$0xf]
        %v865 = vld [vmem:[%s348 + $0x3c] sm:$0xf]
        %v866 = vld [vmem:[%s348 + $0x40] sm:$0xf]
        %v867 = vld [vmem:[%s348 + $0x44] sm:$0xf]
        %v868 = vld [vmem:[%s348 + $0x48] sm:$0xf]
        %v869 = vld [vmem:[%s348 + $0x4c] sm:$0xf]
        %v870 = vld [vmem:[%s348 + $0x50] sm:$0xf]
        %v871 = vld [vmem:[%s348 + $0x54] sm:$0xf]
        %v872 = vld [vmem:[%s348 + $0x58] sm:$0xf]
        %v873 = vld [vmem:[%s348 + $0x5c] sm:$0xf]
        %v874 = vld [vmem:[%s348 + $0x60] sm:$0xf]
        %v875 = vld [vmem:[%s348 + $0x64] sm:$0xf]
        %v876 = vld [vmem:[%s348 + $0x68] sm:$0xf]
        %v877 = vld [vmem:[%s348 + $0x6c] sm:$0xf]
        %v878 = vld [vmem:[%s348 + $0x70] sm:$0xf]
        %v879 = vld [vmem:[%s348 + $0x74] sm:$0xf]
        %v880 = vld [vmem:[%s348 + $0x78] sm:$0xf]
        %v881 = vld [vmem:[%s348 + $0x7c] sm:$0xf]
        %v882 = vld [vmem:[%s348 + $0x80] sm:$0xf]
        %v883 = vld [vmem:[%s348 + $0x84] sm:$0xf]
        %v884 = vld [vmem:[%s348 + $0x88] sm:$0xf]
        %v885 = vld [vmem:[%s348 + $0x8c] sm:$0xf]
        %v886 = vld [vmem:[%s348 + $0x90] sm:$0xf]
        %v887 = vld [vmem:[%s348 + $0x94] sm:$0xf]
        %v888 = vld [vmem:[%s348 + $0x98] sm:$0xf]
        %v889 = vld [vmem:[%s348 + $0x9c] sm:$0xf]
        %v890 = vld [vmem:[%s348 + $0xa0] sm:$0xf]
        %v891 = vld [vmem:[%s348 + $0xa4] sm:$0xf]
        %v892 = vld [vmem:[%s348 + $0xa8] sm:$0xf]
        %v893 = vld [vmem:[%s348 + $0xac] sm:$0xf]
        %v894 = vld [vmem:[%s348 + $0xb0] sm:$0xf]
        %v895 = vld [vmem:[%s348 + $0xb4] sm:$0xf]
        %v896 = vld [vmem:[%s348 + $0xb8] sm:$0xf]
        %v897 = vld [vmem:[%s348 + $0xbc] sm:$0xf]
        %v898 = vld [vmem:[%s348 + $0xc0] sm:$0xf]
        %v899 = vld [vmem:[%s348 + $0xc4] sm:$0xf]
        %v900 = vld [vmem:[%s348 + $0xc8] sm:$0xf]
        %v901 = vld [vmem:[%s348 + $0xcc] sm:$0xf]
        %v902 = vld [vmem:[%s348 + $0xd0] sm:$0xf]
        %v903 = vld [vmem:[%s348 + $0xd4] sm:$0xf]
        %v904 = vld [vmem:[%s348 + $0xd8] sm:$0xf]
        %v905 = vld [vmem:[%s348 + $0xdc] sm:$0xf]
        %v906 = vld [vmem:[%s348 + $0xe0] sm:$0xf]
        %v907 = vld [vmem:[%s348 + $0xe4] sm:$0xf]
        %v908 = vld [vmem:[%s348 + $0xe8] sm:$0xf]
        %v909 = vld [vmem:[%s348 + $0xec] sm:$0xf]
        %v910 = vld [vmem:[%s348 + $0xf0] sm:$0xf]
        %v911 = vld [vmem:[%s348 + $0xf4] sm:$0xf]
        %v912 = vld [vmem:[%s348 + $0xf8] sm:$0xf]
        %v913 = vld [vmem:[%s348 + $0xfc] sm:$0xf]
        %v978 = vunpack.c.l.b16 %v850
        %v979 = vunpack.c.l.b16 %v851
        %v980 = vunpack.c.l.b16 %v852
        %v981 = vunpack.c.l.b16 %v853
        %v982 = vunpack.c.l.b16 %v854
        %v983 = vunpack.c.l.b16 %v855
        %v984 = vunpack.c.l.b16 %v856
        %v985 = vunpack.c.l.b16 %v857
        %v986 = vunpack.c.l.b16 %v858
        %v987 = vunpack.c.l.b16 %v859
        %v988 = vunpack.c.l.b16 %v860
        %v989 = vunpack.c.l.b16 %v861
        %v990 = vunpack.c.l.b16 %v862
        %v991 = vunpack.c.l.b16 %v863
        %v992 = vunpack.c.l.b16 %v864
        %v993 = vunpack.c.l.b16 %v865
        %v994 = vunpack.c.l.b16 %v866
        %v995 = vunpack.c.l.b16 %v867
        %v996 = vunpack.c.l.b16 %v868
        %v997 = vunpack.c.l.b16 %v869
        %v998 = vunpack.c.l.b16 %v870
        %v999 = vunpack.c.l.b16 %v871
        %v1000 = vunpack.c.l.b16 %v872
        %v1001 = vunpack.c.l.b16 %v873
        %v1002 = vunpack.c.l.b16 %v874
        %v1003 = vunpack.c.l.b16 %v875
        %v1004 = vunpack.c.l.b16 %v876
        %v1005 = vunpack.c.l.b16 %v877
        %v1006 = vunpack.c.l.b16 %v878
        %v1007 = vunpack.c.l.b16 %v879
        %v1008 = vunpack.c.l.b16 %v880
        %v1009 = vunpack.c.l.b16 %v881
        %v1010 = vunpack.c.l.b16 %v882
        %v1011 = vunpack.c.l.b16 %v883
        %v1012 = vunpack.c.l.b16 %v884
        %v1013 = vunpack.c.l.b16 %v885
        %v1014 = vunpack.c.l.b16 %v886
        %v1015 = vunpack.c.l.b16 %v887
        %v1016 = vunpack.c.l.b16 %v888
        %v1017 = vunpack.c.l.b16 %v889
        %v1018 = vunpack.c.l.b16 %v890
        %v1019 = vunpack.c.l.b16 %v891
        %v1020 = vunpack.c.l.b16 %v892
        %v1021 = vunpack.c.l.b16 %v893
        %v1022 = vunpack.c.l.b16 %v894
        %v1023 = vunpack.c.l.b16 %v895
        %v1024 = vunpack.c.l.b16 %v896
        %v1025 = vunpack.c.l.b16 %v897
        %v1026 = vunpack.c.l.b16 %v898
        %v1027 = vunpack.c.l.b16 %v899
        %v1028 = vunpack.c.l.b16 %v900
        %v1029 = vunpack.c.l.b16 %v901
        %v1030 = vunpack.c.l.b16 %v902
        %v1031 = vunpack.c.l.b16 %v903
        %v1032 = vunpack.c.l.b16 %v904
        %v1033 = vunpack.c.l.b16 %v905
        %v1034 = vunpack.c.l.b16 %v906
        %v1035 = vunpack.c.l.b16 %v907
        %v1036 = vunpack.c.l.b16 %v908
        %v1037 = vunpack.c.l.b16 %v909
        %v1038 = vunpack.c.l.b16 %v910
        %v1039 = vunpack.c.l.b16 %v911
        %v1040 = vunpack.c.l.b16 %v912
        %v1041 = vunpack.c.l.b16 %v913
        %v1042 = vpack.c.b16 %v979, %v978
        %v1043 = vpack.c.b16 %v981, %v980
        %v1044 = vpack.c.b16 %v983, %v982
        %v1045 = vpack.c.b16 %v985, %v984
        %v1046 = vpack.c.b16 %v987, %v986
        %v1047 = vpack.c.b16 %v989, %v988
        %v1048 = vpack.c.b16 %v991, %v990
        %v1049 = vpack.c.b16 %v993, %v992
        %v1050 = vpack.c.b16 %v995, %v994
        %v1051 = vpack.c.b16 %v997, %v996
        %v1052 = vpack.c.b16 %v999, %v998
        %v1053 = vpack.c.b16 %v1001, %v1000
        %v1054 = vpack.c.b16 %v1003, %v1002
        %v1055 = vpack.c.b16 %v1005, %v1004
        %v1056 = vpack.c.b16 %v1007, %v1006
        %v1057 = vpack.c.b16 %v1009, %v1008
        %v1058 = vpack.c.b16 %v1011, %v1010
        %v1059 = vpack.c.b16 %v1013, %v1012
        %v1060 = vpack.c.b16 %v1015, %v1014
        %v1061 = vpack.c.b16 %v1017, %v1016
        %v1062 = vpack.c.b16 %v1019, %v1018
        %v1063 = vpack.c.b16 %v1021, %v1020
        %v1064 = vpack.c.b16 %v1023, %v1022
        %v1065 = vpack.c.b16 %v1025, %v1024
        %v1066 = vpack.c.b16 %v1027, %v1026
        %v1067 = vpack.c.b16 %v1029, %v1028
        %v1068 = vpack.c.b16 %v1031, %v1030
        %v1069 = vpack.c.b16 %v1033, %v1032
        %v1070 = vpack.c.b16 %v1035, %v1034
        %v1071 = vpack.c.b16 %v1037, %v1036
        %v1072 = vpack.c.b16 %v1039, %v1038
        %v1073 = vpack.c.b16 %v1041, %v1040
        %v1074 = vpack.c.bf16 %v353, %v352
        %v1075 = vpack.c.bf16 %v355, %v354
        %v1076 = vpack.c.bf16 %v357, %v356
        %v1077 = vpack.c.bf16 %v359, %v358
        %v1078 = vpack.c.bf16 %v361, %v360
        %v1079 = vpack.c.bf16 %v363, %v362
        %v1080 = vpack.c.bf16 %v365, %v364
        %v1081 = vpack.c.bf16 %v367, %v366
        %v1082 = vld [vmem:[%s3] sm:$0xf]
        %v1083 = vld [vmem:[%s3 + $0x4] sm:$0xf]
        %v1084 = vld [vmem:[%s3 + $0x8] sm:$0xf]
        %v1085 = vld [vmem:[%s3 + $0xc] sm:$0xf]
        %v1090 = vunpack.c.l.b16 %v1082
        %v1091 = vunpack.c.l.b16 %v1083
        %v1092 = vunpack.c.l.b16 %v1084
        %v1093 = vunpack.c.l.b16 %v1085
        %v1094 = vpack.c.b16 %v1091, %v1090
        %v1095 = vpack.c.b16 %v1093, %v1092
        %vm1098 = vcmask 261120
        %v1100 = vsel %vm1098, %v1074, 0
        %v1103 = vsel %vm1098, %v1075, 0
        %v1106 = vsel %vm1098, %v1076, 0
        %v1109 = vsel %vm1098, %v1077, 0
        %v1112 = vsel %vm1098, %v1078, 0
        %v1115 = vsel %vm1098, %v1079, 0
        %v1118 = vsel %vm1098, %v1080, 0
        %v1121 = vsel %vm1098, %v1081, 0
        %1123 = vmatprep.subr.bf16.mxu0 0
        %1124 = vmatpush1.bf16.msra.mxu0 0
        %1125 = vmatprep.subr.bf16.mxu0 0
        %1126 = vmatpush1.bf16.msra.mxu0 0
        %1127 = vmatprep.subr.bf16.mxu0 0
        %1128 = vmatpush1.bf16.msra.mxu0 0
        %1129 = vmatprep.subr.bf16.mxu0 0
        %1130 = vmatpush1.bf16.msra.mxu0 0
        %1131 = vmatprep.subr.bf16.mxu0 0
        %1132 = vmatpush1.bf16.msra.mxu0 0
        %1133 = vmatprep.subr.bf16.mxu0 0
        %1134 = vmatpush1.bf16.msra.mxu0 0
        %1135 = vmatprep.subr.bf16.mxu0 0
        %1136 = vmatpush1.bf16.msra.mxu0 %v1095
        %1137 = vmatprep.subr.bf16.mxu0 0
        %1138 = vmatpush1.bf16.msra.mxu0 %v1094
        %1139 = vmatprep.subr.bf16.mxu0 0
        %1140 = vmatpush2.bf16.msra.mxu0 0
        %1141 = vmatprep.subr.bf16.mxu0 0
        %1142 = vmatpush2.bf16.msra.mxu0 0
        %1143 = vmatprep.subr.bf16.mxu0 0
        %1144 = vmatpush2.bf16.msra.mxu0 0
        %1145 = vmatprep.subr.bf16.mxu0 0
        %1146 = vmatpush2.bf16.msra.mxu0 0
        %1147 = vmatprep.subr.bf16.mxu0 0
        %1148 = vmatpush2.bf16.msra.mxu0 0
        %1149 = vmatprep.subr.bf16.mxu0 0
        %1150 = vmatpush2.bf16.msra.mxu0 0
        %1151 = vmatprep.subr.bf16.mxu0 0
        %1152 = vmatpush2.bf16.msra.mxu0 0
        %1153 = vmatprep.subr.bf16.mxu0 0
        %1154 = vmatpush2.bf16.msra.mxu0 0
        %1155 = vmatprep.mubr.bf16.mxu0 0
        %1156 = vmatmul.mubr.bf16.gmra.mxu0 %v1100
        %v1157 = vpop.f32.mrf.mxu0
        %v1158 = vadd.f32 0.0, %v1157
        %v1159 = vpop.f32.mrf.mxu0
        %v1160 = vpop.f32.mrf.mxu0
        %v1161 = vadd.f32 0.0, %v1160
        %v1162 = vpop.f32.mrf.mxu0
        %1163 = vmatprep.mubr.bf16.mxu0 0
        %1164 = vmatmul.mubr.bf16.gmra.mxu0 %v1103
        %v1165 = vpop.f32.mrf.mxu0
        %v1166 = vadd.f32 0.0, %v1165
        %v1167 = vpop.f32.mrf.mxu0
        %v1168 = vpop.f32.mrf.mxu0
        %v1169 = vadd.f32 0.0, %v1168
        %v1170 = vpop.f32.mrf.mxu0
        %1171 = vmatprep.mubr.bf16.mxu0 0
        %1172 = vmatmul.mubr.bf16.gmra.mxu0 %v1106
        %v1173 = vpop.f32.mrf.mxu0
        %v1174 = vadd.f32 0.0, %v1173
        %v1175 = vpop.f32.mrf.mxu0
        %v1176 = vpop.f32.mrf.mxu0
        %v1177 = vadd.f32 0.0, %v1176
        %v1178 = vpop.f32.mrf.mxu0
        %1179 = vmatprep.mubr.bf16.mxu0 0
        %1180 = vmatmul.mubr.bf16.gmra.mxu0 %v1109
        %v1181 = vpop.f32.mrf.mxu0
        %v1182 = vadd.f32 0.0, %v1181
        %v1183 = vpop.f32.mrf.mxu0
        %v1184 = vpop.f32.mrf.mxu0
        %v1185 = vadd.f32 0.0, %v1184
        %v1186 = vpop.f32.mrf.mxu0
        %1187 = vmatprep.mubr.bf16.mxu0 0
        %1188 = vmatmul.mubr.bf16.gmra.mxu0 %v1112
        %v1189 = vpop.f32.mrf.mxu0
        %v1190 = vadd.f32 0.0, %v1189
        %v1191 = vpop.f32.mrf.mxu0
        %v1192 = vpop.f32.mrf.mxu0
        %v1193 = vadd.f32 0.0, %v1192
        %v1194 = vpop.f32.mrf.mxu0
        %1195 = vmatprep.mubr.bf16.mxu0 0
        %1196 = vmatmul.mubr.bf16.gmra.mxu0 %v1115
        %v1197 = vpop.f32.mrf.mxu0
        %v1198 = vadd.f32 0.0, %v1197
        %v1199 = vpop.f32.mrf.mxu0
        %v1200 = vpop.f32.mrf.mxu0
        %v1201 = vadd.f32 0.0, %v1200
        %v1202 = vpop.f32.mrf.mxu0
        %1203 = vmatprep.mubr.bf16.mxu0 0
        %1204 = vmatmul.mubr.bf16.gmra.mxu0 %v1118
        %v1205 = vpop.f32.mrf.mxu0
        %v1206 = vadd.f32 0.0, %v1205
        %v1207 = vpop.f32.mrf.mxu0
        %v1208 = vpop.f32.mrf.mxu0
        %v1209 = vadd.f32 0.0, %v1208
        %v1210 = vpop.f32.mrf.mxu0
        %1211 = vmatprep.mubr.bf16.mxu0 0
        %1212 = vmatmul.mubr.bf16.gmra.mxu0 %v1121
        %v1213 = vpop.f32.mrf.mxu0
        %v1214 = vadd.f32 0.0, %v1213
        %v1215 = vpop.f32.mrf.mxu0
        %v1216 = vpop.f32.mrf.mxu0
        %v1217 = vadd.f32 0.0, %v1216
        %v1218 = vpop.f32.mrf.mxu0
        %1219 = vdwg.mxu0
        %v1220 = vpack.c.bf16 %v1161, %v1158
        %v1221 = vpack.c.bf16 %v1169, %v1166
        %v1222 = vpack.c.bf16 %v1177, %v1174
        %v1223 = vpack.c.bf16 %v1185, %v1182
        %v1224 = vpack.c.bf16 %v1193, %v1190
        %v1225 = vpack.c.bf16 %v1201, %v1198
        %v1226 = vpack.c.bf16 %v1209, %v1206
        %v1227 = vpack.c.bf16 %v1217, %v1214
        %v1228 = vld [vmem:[%s5] sm:$0x1]
        %v1230 = vlaneseq
        %v1231 = vshrl.u32 %v1230, 7
        %v1232 = vsub.s32 0, %v1231
        %v1233 = vrot.slane %v1228, %v1232
        %1234 = vrot.lane.b32.xlu0 %v1233, 32
        %v1235 = vpop.permute.xlu0 %1234
        %v1237 = vadd.f32 %v1158, %v1235
        %v1238 = vadd.f32 %v1161, %v1235
        %v1239 = vadd.f32 %v1166, %v1235
        %v1240 = vadd.f32 %v1169, %v1235
        %v1241 = vadd.f32 %v1174, %v1235
        %v1242 = vadd.f32 %v1177, %v1235
        %v1243 = vadd.f32 %v1182, %v1235
        %v1244 = vadd.f32 %v1185, %v1235
        %v1245 = vadd.f32 %v1190, %v1235
        %v1246 = vadd.f32 %v1193, %v1235
        %v1247 = vadd.f32 %v1198, %v1235
        %v1248 = vadd.f32 %v1201, %v1235
        %v1249 = vadd.f32 %v1206, %v1235
        %v1250 = vadd.f32 %v1209, %v1235
        %v1251 = vadd.f32 %v1214, %v1235
        %v1252 = vadd.f32 %v1217, %v1235
        %v1253 = vld [vmem:[%s4] sm:$0xf]
        %vm1254 = vcmask 64512
        %v1256 = vsel %vm1254, %v1042, 0
        %v1259 = vsel %vm1254, %v1043, 0
        %v1262 = vsel %vm1254, %v1044, 0
        %v1265 = vsel %vm1254, %v1045, 0
        %v1268 = vsel %vm1254, %v1046, 0
        %v1271 = vsel %vm1254, %v1047, 0
        %v1274 = vsel %vm1254, %v1048, 0
        %v1277 = vsel %vm1254, %v1049, 0
        %v1280 = vsel %vm1254, %v1050, 0
        %v1283 = vsel %vm1254, %v1051, 0
        %v1286 = vsel %vm1254, %v1052, 0
        %v1289 = vsel %vm1254, %v1053, 0
        %v1292 = vsel %vm1254, %v1054, 0
        %v1295 = vsel %vm1254, %v1055, 0
        %v1298 = vsel %vm1254, %v1056, 0
        %v1301 = vsel %vm1254, %v1057, 0
        %v1304 = vsel %vm1254, %v1058, 0
        %v1307 = vsel %vm1254, %v1059, 0
        %v1310 = vsel %vm1254, %v1060, 0
        %v1313 = vsel %vm1254, %v1061, 0
        %v1316 = vsel %vm1254, %v1062, 0
        %v1319 = vsel %vm1254, %v1063, 0
        %v1322 = vsel %vm1254, %v1064, 0
        %v1325 = vsel %vm1254, %v1065, 0
        %v1328 = vsel %vm1254, %v1066, 0
        %v1331 = vsel %vm1254, %v1067, 0
        %v1334 = vsel %vm1254, %v1068, 0
        %v1337 = vsel %vm1254, %v1069, 0
        %v1340 = vsel %vm1254, %v1070, 0
        %v1343 = vsel %vm1254, %v1071, 0
        %v1346 = vsel %vm1254, %v1072, 0
        %v1349 = vsel %vm1254, %v1073, 0
        %vm1351 = vcmask 1043456
        %v1353 = vsel %vm1351, %v1253, 0
        %1355 = vmatprep.subr.bf16.mxu0 0
        %1356 = vmatpush1.bf16.msra.mxu0 %v1227
        %1357 = vmatprep.subr.bf16.mxu0 0
        %1358 = vmatpush1.bf16.msra.mxu0 %v1226
        %1359 = vmatprep.subr.bf16.mxu0 0
        %1360 = vmatpush1.bf16.msra.mxu0 %v1225
        %1361 = vmatprep.subr.bf16.mxu0 0
        %1362 = vmatpush1.bf16.msra.mxu0 %v1224
        %1363 = vmatprep.subr.bf16.mxu0 0
        %1364 = vmatpush1.bf16.msra.mxu0 %v1223
        %1365 = vmatprep.subr.bf16.mxu0 0
        %1366 = vmatpush1.bf16.msra.mxu0 %v1222
        %1367 = vmatprep.subr.bf16.mxu0 0
        %1368 = vmatpush1.bf16.msra.mxu0 %v1221
        %1369 = vmatprep.subr.bf16.mxu0 0
        %1370 = vmatpush1.bf16.msra.mxu0 %v1220
        %1371 = vmatprep.subr.bf16.mxu0 0
        %1372 = vmatpush2.bf16.msra.mxu0 0
        %1373 = vmatprep.subr.bf16.mxu0 0
        %1374 = vmatpush2.bf16.msra.mxu0 0
        %1375 = vmatprep.subr.bf16.mxu0 0
        %1376 = vmatpush2.bf16.msra.mxu0 0
        %1377 = vmatprep.subr.bf16.mxu0 0
        %1378 = vmatpush2.bf16.msra.mxu0 0
        %1379 = vmatprep.subr.bf16.mxu0 0
        %1380 = vmatpush2.bf16.msra.mxu0 0
        %1381 = vmatprep.subr.bf16.mxu0 0
        %1382 = vmatpush2.bf16.msra.mxu0 0
        %1383 = vmatprep.subr.bf16.mxu0 0
        %1384 = vmatpush2.bf16.msra.mxu0 0
        %1385 = vmatprep.subr.bf16.mxu0 0
        %1386 = vmatpush2.bf16.msra.mxu0 %v1353
        %1387 = vmatprep.mubr.bf16.mxu0 %v1256
        %1388 = vmatmul.mubr.bf16.gmra.mxu0 %v818
        %v1389 = vpop.f32.mrf.mxu0
        %v1390 = vadd.f32 0.0, %v1389
        %v1391 = vpop.f32.mrf.mxu0
        %v1392 = vpop.f32.mrf.mxu0
        %v1393 = vadd.f32 0.0, %v1392
        %v1394 = vpop.f32.mrf.mxu0
        %1395 = vmatprep.mubr.bf16.mxu0 %v1259
        %1396 = vmatmul.mubr.bf16.gmra.mxu0 %v819
        %v1397 = vpop.f32.mrf.mxu0
        %v1398 = vadd.f32 0.0, %v1397
        %v1399 = vpop.f32.mrf.mxu0
        %v1400 = vpop.f32.mrf.mxu0
        %v1401 = vadd.f32 0.0, %v1400
        %v1402 = vpop.f32.mrf.mxu0
        %1403 = vmatprep.mubr.bf16.mxu0 %v1262
        %1404 = vmatmul.mubr.bf16.gmra.mxu0 %v820
        %v1405 = vpop.f32.mrf.mxu0
        %v1406 = vadd.f32 0.0, %v1405
        %v1407 = vpop.f32.mrf.mxu0
        %v1408 = vpop.f32.mrf.mxu0
        %v1409 = vadd.f32 0.0, %v1408
        %v1410 = vpop.f32.mrf.mxu0
        %1411 = vmatprep.mubr.bf16.mxu0 %v1265
        %1412 = vmatmul.mubr.bf16.gmra.mxu0 %v821
        %v1413 = vpop.f32.mrf.mxu0
        %v1414 = vadd.f32 0.0, %v1413
        %v1415 = vpop.f32.mrf.mxu0
        %v1416 = vpop.f32.mrf.mxu0
        %v1417 = vadd.f32 0.0, %v1416
        %v1418 = vpop.f32.mrf.mxu0
        %1419 = vmatprep.mubr.bf16.mxu0 %v1268
        %1420 = vmatmul.mubr.bf16.gmra.mxu0 %v822
        %v1421 = vpop.f32.mrf.mxu0
        %v1422 = vadd.f32 0.0, %v1421
        %v1423 = vpop.f32.mrf.mxu0
        %v1424 = vpop.f32.mrf.mxu0
        %v1425 = vadd.f32 0.0, %v1424
        %v1426 = vpop.f32.mrf.mxu0
        %1427 = vmatprep.mubr.bf16.mxu0 %v1271
        %1428 = vmatmul.mubr.bf16.gmra.mxu0 %v823
        %v1429 = vpop.f32.mrf.mxu0
        %v1430 = vadd.f32 0.0, %v1429
        %v1431 = vpop.f32.mrf.mxu0
        %v1432 = vpop.f32.mrf.mxu0
        %v1433 = vadd.f32 0.0, %v1432
        %v1434 = vpop.f32.mrf.mxu0
        %1435 = vmatprep.mubr.bf16.mxu0 %v1274
        %1436 = vmatmul.mubr.bf16.gmra.mxu0 %v824
        %v1437 = vpop.f32.mrf.mxu0
        %v1438 = vadd.f32 0.0, %v1437
        %v1439 = vpop.f32.mrf.mxu0
        %v1440 = vpop.f32.mrf.mxu0
        %v1441 = vadd.f32 0.0, %v1440
        %v1442 = vpop.f32.mrf.mxu0
        %1443 = vmatprep.mubr.bf16.mxu0 %v1277
        %1444 = vmatmul.mubr.bf16.gmra.mxu0 %v825
        %v1445 = vpop.f32.mrf.mxu0
        %v1446 = vadd.f32 0.0, %v1445
        %v1447 = vpop.f32.mrf.mxu0
        %v1448 = vpop.f32.mrf.mxu0
        %v1449 = vadd.f32 0.0, %v1448
        %v1450 = vpop.f32.mrf.mxu0
        %1451 = vmatprep.mubr.bf16.mxu0 %v1280
        %1452 = vmatmul.mubr.bf16.gmra.mxu0 %v826
        %v1453 = vpop.f32.mrf.mxu0
        %v1454 = vadd.f32 0.0, %v1453
        %v1455 = vpop.f32.mrf.mxu0
        %v1456 = vpop.f32.mrf.mxu0
        %v1457 = vadd.f32 0.0, %v1456
        %v1458 = vpop.f32.mrf.mxu0
        %1459 = vmatprep.mubr.bf16.mxu0 %v1283
        %1460 = vmatmul.mubr.bf16.gmra.mxu0 %v827
        %v1461 = vpop.f32.mrf.mxu0
        %v1462 = vadd.f32 0.0, %v1461
        %v1463 = vpop.f32.mrf.mxu0
        %v1464 = vpop.f32.mrf.mxu0
        %v1465 = vadd.f32 0.0, %v1464
        %v1466 = vpop.f32.mrf.mxu0
        %1467 = vmatprep.mubr.bf16.mxu0 %v1286
        %1468 = vmatmul.mubr.bf16.gmra.mxu0 %v828
        %v1469 = vpop.f32.mrf.mxu0
        %v1470 = vadd.f32 0.0, %v1469
        %v1471 = vpop.f32.mrf.mxu0
        %v1472 = vpop.f32.mrf.mxu0
        %v1473 = vadd.f32 0.0, %v1472
        %v1474 = vpop.f32.mrf.mxu0
        %1475 = vmatprep.mubr.bf16.mxu0 %v1289
        %1476 = vmatmul.mubr.bf16.gmra.mxu0 %v829
        %v1477 = vpop.f32.mrf.mxu0
        %v1478 = vadd.f32 0.0, %v1477
        %v1479 = vpop.f32.mrf.mxu0
        %v1480 = vpop.f32.mrf.mxu0
        %v1481 = vadd.f32 0.0, %v1480
        %v1482 = vpop.f32.mrf.mxu0
        %1483 = vmatprep.mubr.bf16.mxu0 %v1292
        %1484 = vmatmul.mubr.bf16.gmra.mxu0 %v830
        %v1485 = vpop.f32.mrf.mxu0
        %v1486 = vadd.f32 0.0, %v1485
        %v1487 = vpop.f32.mrf.mxu0
        %v1488 = vpop.f32.mrf.mxu0
        %v1489 = vadd.f32 0.0, %v1488
        %v1490 = vpop.f32.mrf.mxu0
        %1491 = vmatprep.mubr.bf16.mxu0 %v1295
        %1492 = vmatmul.mubr.bf16.gmra.mxu0 %v831
        %v1493 = vpop.f32.mrf.mxu0
        %v1494 = vadd.f32 0.0, %v1493
        %v1495 = vpop.f32.mrf.mxu0
        %v1496 = vpop.f32.mrf.mxu0
        %v1497 = vadd.f32 0.0, %v1496
        %v1498 = vpop.f32.mrf.mxu0
        %1499 = vmatprep.mubr.bf16.mxu0 %v1298
        %1500 = vmatmul.mubr.bf16.gmra.mxu0 %v832
        %v1501 = vpop.f32.mrf.mxu0
        %v1502 = vadd.f32 0.0, %v1501
        %v1503 = vpop.f32.mrf.mxu0
        %v1504 = vpop.f32.mrf.mxu0
        %v1505 = vadd.f32 0.0, %v1504
        %v1506 = vpop.f32.mrf.mxu0
        %1507 = vmatprep.mubr.bf16.mxu0 %v1301
        %1508 = vmatmul.mubr.bf16.gmra.mxu0 %v833
        %v1509 = vpop.f32.mrf.mxu0
        %v1510 = vadd.f32 0.0, %v1509
        %v1511 = vpop.f32.mrf.mxu0
        %v1512 = vpop.f32.mrf.mxu0
        %v1513 = vadd.f32 0.0, %v1512
        %v1514 = vpop.f32.mrf.mxu0
        %1515 = vmatprep.mubr.bf16.mxu0 %v1304
        %1516 = vmatmul.mubr.bf16.gmra.mxu0 %v834
        %v1517 = vpop.f32.mrf.mxu0
        %v1518 = vadd.f32 0.0, %v1517
        %v1519 = vpop.f32.mrf.mxu0
        %v1520 = vpop.f32.mrf.mxu0
        %v1521 = vadd.f32 0.0, %v1520
        %v1522 = vpop.f32.mrf.mxu0
        %1523 = vmatprep.mubr.bf16.mxu0 %v1307
        %1524 = vmatmul.mubr.bf16.gmra.mxu0 %v835
        %v1525 = vpop.f32.mrf.mxu0
        %v1526 = vadd.f32 0.0, %v1525
        %v1527 = vpop.f32.mrf.mxu0
        %v1528 = vpop.f32.mrf.mxu0
        %v1529 = vadd.f32 0.0, %v1528
        %v1530 = vpop.f32.mrf.mxu0
        %1531 = vmatprep.mubr.bf16.mxu0 %v1310
        %1532 = vmatmul.mubr.bf16.gmra.mxu0 %v836
        %v1533 = vpop.f32.mrf.mxu0
        %v1534 = vadd.f32 0.0, %v1533
        %v1535 = vpop.f32.mrf.mxu0
        %v1536 = vpop.f32.mrf.mxu0
        %v1537 = vadd.f32 0.0, %v1536
        %v1538 = vpop.f32.mrf.mxu0
        %1539 = vmatprep.mubr.bf16.mxu0 %v1313
        %1540 = vmatmul.mubr.bf16.gmra.mxu0 %v837
        %v1541 = vpop.f32.mrf.mxu0
        %v1542 = vadd.f32 0.0, %v1541
        %v1543 = vpop.f32.mrf.mxu0
        %v1544 = vpop.f32.mrf.mxu0
        %v1545 = vadd.f32 0.0, %v1544
        %v1546 = vpop.f32.mrf.mxu0
        %1547 = vmatprep.mubr.bf16.mxu0 %v1316
        %1548 = vmatmul.mubr.bf16.gmra.mxu0 %v838
        %v1549 = vpop.f32.mrf.mxu0
        %v1550 = vadd.f32 0.0, %v1549
        %v1551 = vpop.f32.mrf.mxu0
        %v1552 = vpop.f32.mrf.mxu0
        %v1553 = vadd.f32 0.0, %v1552
        %v1554 = vpop.f32.mrf.mxu0
        %1555 = vmatprep.mubr.bf16.mxu0 %v1319
        %1556 = vmatmul.mubr.bf16.gmra.mxu0 %v839
        %v1557 = vpop.f32.mrf.mxu0
        %v1558 = vadd.f32 0.0, %v1557
        %v1559 = vpop.f32.mrf.mxu0
        %v1560 = vpop.f32.mrf.mxu0
        %v1561 = vadd.f32 0.0, %v1560
        %v1562 = vpop.f32.mrf.mxu0
        %1563 = vmatprep.mubr.bf16.mxu0 %v1322
        %1564 = vmatmul.mubr.bf16.gmra.mxu0 %v840
        %v1565 = vpop.f32.mrf.mxu0
        %v1566 = vadd.f32 0.0, %v1565
        %v1567 = vpop.f32.mrf.mxu0
        %v1568 = vpop.f32.mrf.mxu0
        %v1569 = vadd.f32 0.0, %v1568
        %v1570 = vpop.f32.mrf.mxu0
        %1571 = vmatprep.mubr.bf16.mxu0 %v1325
        %1572 = vmatmul.mubr.bf16.gmra.mxu0 %v841
        %v1573 = vpop.f32.mrf.mxu0
        %v1574 = vadd.f32 0.0, %v1573
        %v1575 = vpop.f32.mrf.mxu0
        %v1576 = vpop.f32.mrf.mxu0
        %v1577 = vadd.f32 0.0, %v1576
        %v1578 = vpop.f32.mrf.mxu0
        %1579 = vmatprep.mubr.bf16.mxu0 %v1328
        %1580 = vmatmul.mubr.bf16.gmra.mxu0 %v842
        %v1581 = vpop.f32.mrf.mxu0
        %v1582 = vadd.f32 0.0, %v1581
        %v1583 = vpop.f32.mrf.mxu0
        %v1584 = vpop.f32.mrf.mxu0
        %v1585 = vadd.f32 0.0, %v1584
        %v1586 = vpop.f32.mrf.mxu0
        %1587 = vmatprep.mubr.bf16.mxu0 %v1331
        %1588 = vmatmul.mubr.bf16.gmra.mxu0 %v843
        %v1589 = vpop.f32.mrf.mxu0
        %v1590 = vadd.f32 0.0, %v1589
        %v1591 = vpop.f32.mrf.mxu0
        %v1592 = vpop.f32.mrf.mxu0
        %v1593 = vadd.f32 0.0, %v1592
        %v1594 = vpop.f32.mrf.mxu0
        %1595 = vmatprep.mubr.bf16.mxu0 %v1334
        %1596 = vmatmul.mubr.bf16.gmra.mxu0 %v844
        %v1597 = vpop.f32.mrf.mxu0
        %v1598 = vadd.f32 0.0, %v1597
        %v1599 = vpop.f32.mrf.mxu0
        %v1600 = vpop.f32.mrf.mxu0
        %v1601 = vadd.f32 0.0, %v1600
        %v1602 = vpop.f32.mrf.mxu0
        %1603 = vmatprep.mubr.bf16.mxu0 %v1337
        %1604 = vmatmul.mubr.bf16.gmra.mxu0 %v845
        %v1605 = vpop.f32.mrf.mxu0
        %v1606 = vadd.f32 0.0, %v1605
        %v1607 = vpop.f32.mrf.mxu0
        %v1608 = vpop.f32.mrf.mxu0
        %v1609 = vadd.f32 0.0, %v1608
        %v1610 = vpop.f32.mrf.mxu0
        %1611 = vmatprep.mubr.bf16.mxu0 %v1340
        %1612 = vmatmul.mubr.bf16.gmra.mxu0 %v846
        %v1613 = vpop.f32.mrf.mxu0
        %v1614 = vadd.f32 0.0, %v1613
        %v1615 = vpop.f32.mrf.mxu0
        %v1616 = vpop.f32.mrf.mxu0
        %v1617 = vadd.f32 0.0, %v1616
        %v1618 = vpop.f32.mrf.mxu0
        %1619 = vmatprep.mubr.bf16.mxu0 %v1343
        %1620 = vmatmul.mubr.bf16.gmra.mxu0 %v847
        %v1621 = vpop.f32.mrf.mxu0
        %v1622 = vadd.f32 0.0, %v1621
        %v1623 = vpop.f32.mrf.mxu0
        %v1624 = vpop.f32.mrf.mxu0
        %v1625 = vadd.f32 0.0, %v1624
        %v1626 = vpop.f32.mrf.mxu0
        %1627 = vmatprep.mubr.bf16.mxu0 %v1346
        %1628 = vmatmul.mubr.bf16.gmra.mxu0 %v848
        %v1629 = vpop.f32.mrf.mxu0
        %v1630 = vadd.f32 0.0, %v1629
        %v1631 = vpop.f32.mrf.mxu0
        %v1632 = vpop.f32.mrf.mxu0
        %v1633 = vadd.f32 0.0, %v1632
        %v1634 = vpop.f32.mrf.mxu0
        %1635 = vmatprep.mubr.bf16.mxu0 %v1349
        %1636 = vmatmul.mubr.bf16.gmra.mxu0 %v849
        %v1637 = vpop.f32.mrf.mxu0
        %v1638 = vadd.f32 0.0, %v1637
        %v1639 = vpop.f32.mrf.mxu0
        %v1640 = vpop.f32.mrf.mxu0
        %v1641 = vadd.f32 0.0, %v1640
        %v1642 = vpop.f32.mrf.mxu0
        %1643 = vdwg.mxu0
        %v1644 = vmax.f32 %v1390, %v1454
        %v1645 = vmax.f32 %v1393, %v1457
        %v1646 = vmax.f32 %v1398, %v1462
        %v1647 = vmax.f32 %v1401, %v1465
        %v1648 = vmax.f32 %v1406, %v1470
        %v1649 = vmax.f32 %v1409, %v1473
        %v1650 = vmax.f32 %v1414, %v1478
        %v1651 = vmax.f32 %v1417, %v1481
        %v1652 = vmax.f32 %v1422, %v1486
        %v1653 = vmax.f32 %v1425, %v1489
        %v1654 = vmax.f32 %v1430, %v1494
        %v1655 = vmax.f32 %v1433, %v1497
        %v1656 = vmax.f32 %v1438, %v1502
        %v1657 = vmax.f32 %v1441, %v1505
        %v1658 = vmax.f32 %v1446, %v1510
        %v1659 = vmax.f32 %v1449, %v1513
        %v1660 = vmax.f32 %v1644, %v1518
        %v1661 = vmax.f32 %v1645, %v1521
        %v1662 = vmax.f32 %v1646, %v1526
        %v1663 = vmax.f32 %v1647, %v1529
        %v1664 = vmax.f32 %v1648, %v1534
        %v1665 = vmax.f32 %v1649, %v1537
        %v1666 = vmax.f32 %v1650, %v1542
        %v1667 = vmax.f32 %v1651, %v1545
        %v1668 = vmax.f32 %v1652, %v1550
        %v1669 = vmax.f32 %v1653, %v1553
        %v1670 = vmax.f32 %v1654, %v1558
        %v1671 = vmax.f32 %v1655, %v1561
        %v1672 = vmax.f32 %v1656, %v1566
        %v1673 = vmax.f32 %v1657, %v1569
        %v1674 = vmax.f32 %v1658, %v1574
        %v1675 = vmax.f32 %v1659, %v1577
        %v1676 = vmax.f32 %v1660, %v1582
        %v1677 = vmax.f32 %v1661, %v1585
        %v1678 = vmax.f32 %v1662, %v1590
        %v1679 = vmax.f32 %v1663, %v1593
        %v1680 = vmax.f32 %v1664, %v1598
        %v1681 = vmax.f32 %v1665, %v1601
        %v1682 = vmax.f32 %v1666, %v1606
        %v1683 = vmax.f32 %v1667, %v1609
        %v1684 = vmax.f32 %v1668, %v1614
        %v1685 = vmax.f32 %v1669, %v1617
        %v1686 = vmax.f32 %v1670, %v1622
        %v1687 = vmax.f32 %v1671, %v1625
        %v1688 = vmax.f32 %v1672, %v1630
        %v1689 = vmax.f32 %v1673, %v1633
        %v1690 = vmax.f32 %v1674, %v1638
        %v1691 = vmax.f32 %v1675, %v1641
        %1708 = vrot.lane.b32.xlu0 %v1237, 96
        %v1709 = vpop.permute.xlu0 %1708
        %1710 = vrot.lane.b32.xlu0 %v1238, 96
        %v1711 = vpop.permute.xlu0 %1710
        %1712 = vrot.lane.b32.xlu0 %v1239, 96
        %v1713 = vpop.permute.xlu0 %1712
        %1714 = vrot.lane.b32.xlu0 %v1240, 96
        %v1715 = vpop.permute.xlu0 %1714
        %1716 = vrot.lane.b32.xlu0 %v1241, 96
        %v1717 = vpop.permute.xlu0 %1716
        %1718 = vrot.lane.b32.xlu0 %v1242, 96
        %v1719 = vpop.permute.xlu0 %1718
        %1720 = vrot.lane.b32.xlu0 %v1243, 96
        %v1721 = vpop.permute.xlu0 %1720
        %1722 = vrot.lane.b32.xlu0 %v1244, 96
        %v1723 = vpop.permute.xlu0 %1722
        %1724 = vrot.lane.b32.xlu0 %v1245, 96
        %v1725 = vpop.permute.xlu0 %1724
        %1726 = vrot.lane.b32.xlu0 %v1246, 96
        %v1727 = vpop.permute.xlu0 %1726
        %1728 = vrot.lane.b32.xlu0 %v1247, 96
        %v1729 = vpop.permute.xlu0 %1728
        %1730 = vrot.lane.b32.xlu0 %v1248, 96
        %v1731 = vpop.permute.xlu0 %1730
        %1732 = vrot.lane.b32.xlu0 %v1249, 96
        %v1733 = vpop.permute.xlu0 %1732
        %1734 = vrot.lane.b32.xlu0 %v1250, 96
        %v1735 = vpop.permute.xlu0 %1734
        %1736 = vrot.lane.b32.xlu0 %v1251, 96
        %v1737 = vpop.permute.xlu0 %1736
        %1738 = vrot.lane.b32.xlu0 %v1252, 96
        %v1739 = vpop.permute.xlu0 %1738
        %v1756 = vadd.f32 %v1676, %v1709
        %v1757 = vadd.f32 %v1677, %v1711
        %v1758 = vadd.f32 %v1678, %v1713
        %v1759 = vadd.f32 %v1679, %v1715
        %v1760 = vadd.f32 %v1680, %v1717
        %v1761 = vadd.f32 %v1681, %v1719
        %v1762 = vadd.f32 %v1682, %v1721
        %v1763 = vadd.f32 %v1683, %v1723
        %v1764 = vadd.f32 %v1684, %v1725
        %v1765 = vadd.f32 %v1685, %v1727
        %v1766 = vadd.f32 %v1686, %v1729
        %v1767 = vadd.f32 %v1687, %v1731
        %v1768 = vadd.f32 %v1688, %v1733
        %v1769 = vadd.f32 %v1689, %v1735
        %v1770 = vadd.f32 %v1690, %v1737
        %v1771 = vadd.f32 %v1691, %v1739
        %v1772 = vmax.f32 %v1756, 0.0
        %v1773 = vmax.f32 %v1757, 0.0
        %v1774 = vmax.f32 %v1758, 0.0
        %v1775 = vmax.f32 %v1759, 0.0
        %v1776 = vmax.f32 %v1760, 0.0
        %v1777 = vmax.f32 %v1761, 0.0
        %v1778 = vmax.f32 %v1762, 0.0
        %v1779 = vmax.f32 %v1763, 0.0
        %v1780 = vmax.f32 %v1764, 0.0
        %v1781 = vmax.f32 %v1765, 0.0
        %v1782 = vmax.f32 %v1766, 0.0
        %v1783 = vmax.f32 %v1767, 0.0
        %v1784 = vmax.f32 %v1768, 0.0
        %v1785 = vmax.f32 %v1769, 0.0
        %v1786 = vmax.f32 %v1770, 0.0
        %v1787 = vmax.f32 %v1771, 0.0
        %v1788 = vld [vmem:[%s6] sm:$0x1]
        %v1790 = vlaneseq
        %v1791 = vshrl.u32 %v1790, 7
        %v1792 = vsub.s32 0, %v1791
        %v1793 = vrot.slane %v1788, %v1792
        %v1795 = vmul.f32 %v1772, %v1793
        %v1796 = vmul.f32 %v1773, %v1793
        %v1797 = vmul.f32 %v1774, %v1793
        %v1798 = vmul.f32 %v1775, %v1793
        %v1799 = vmul.f32 %v1776, %v1793
        %v1800 = vmul.f32 %v1777, %v1793
        %v1801 = vmul.f32 %v1778, %v1793
        %v1802 = vmul.f32 %v1779, %v1793
        %v1803 = vmul.f32 %v1780, %v1793
        %v1804 = vmul.f32 %v1781, %v1793
        %v1805 = vmul.f32 %v1782, %v1793
        %v1806 = vmul.f32 %v1783, %v1793
        %v1807 = vmul.f32 %v1784, %v1793
        %v1808 = vmul.f32 %v1785, %v1793
        %v1809 = vmul.f32 %v1786, %v1793
        %v1810 = vmul.f32 %v1787, %v1793
        %v1811 = vld [vmem:[%s7] sm:$0x1]
        %v1813 = vlaneseq
        %v1814 = vshrl.u32 %v1813, 7
        %v1815 = vsub.s32 0, %v1814
        %v1816 = vrot.slane %v1811, %v1815
        %v1818 = vadd.f32 %v1795, %v1816
        %v1819 = vadd.f32 %v1796, %v1816
        %v1820 = vadd.f32 %v1797, %v1816
        %v1821 = vadd.f32 %v1798, %v1816
        %v1822 = vadd.f32 %v1799, %v1816
        %v1823 = vadd.f32 %v1800, %v1816
        %v1824 = vadd.f32 %v1801, %v1816
        %v1825 = vadd.f32 %v1802, %v1816
        %v1826 = vadd.f32 %v1803, %v1816
        %v1827 = vadd.f32 %v1804, %v1816
        %v1828 = vadd.f32 %v1805, %v1816
        %v1829 = vadd.f32 %v1806, %v1816
        %v1830 = vadd.f32 %v1807, %v1816
        %v1831 = vadd.f32 %v1808, %v1816
        %v1832 = vadd.f32 %v1809, %v1816
        %v1833 = vadd.f32 %v1810, %v1816
        %v1834 = vadd.f32 %v1818, %v352
        %v1835 = vadd.f32 %v1819, %v353
        %v1836 = vadd.f32 %v1820, %v354
        %v1837 = vadd.f32 %v1821, %v355
        %v1838 = vadd.f32 %v1822, %v356
        %v1839 = vadd.f32 %v1823, %v357
        %v1840 = vadd.f32 %v1824, %v358
        %v1841 = vadd.f32 %v1825, %v359
        %v1842 = vadd.f32 %v1826, %v360
        %v1843 = vadd.f32 %v1827, %v361
        %v1844 = vadd.f32 %v1828, %v362
        %v1845 = vadd.f32 %v1829, %v363
        %v1846 = vadd.f32 %v1830, %v364
        %v1847 = vadd.f32 %v1831, %v365
        %v1848 = vadd.f32 %v1832, %v366
        %v1849 = vadd.f32 %v1833, %v367
        %v1850 = vpack.c.bf16 %v1835, %v1834
        %v1851 = vpack.c.bf16 %v1837, %v1836
        %v1852 = vpack.c.bf16 %v1839, %v1838
        %v1853 = vpack.c.bf16 %v1841, %v1840
        %v1854 = vpack.c.bf16 %v1843, %v1842
        %v1855 = vpack.c.bf16 %v1845, %v1844
        %v1856 = vpack.c.bf16 %v1847, %v1846
        %v1857 = vpack.c.bf16 %v1849, %v1848
        %s1858 = scalar_lea.vmem %s3, 16
        %v1859 = vld [vmem:[%s1858] sm:$0xf]
        %v1860 = vld [vmem:[%s1858 + $0x4] sm:$0xf]
        %v1861 = vld [vmem:[%s1858 + $0x8] sm:$0xf]
        %v1862 = vld [vmem:[%s1858 + $0xc] sm:$0xf]
        %v1867 = vunpack.c.l.b16 %v1859
        %v1868 = vunpack.c.l.b16 %v1860
        %v1869 = vunpack.c.l.b16 %v1861
        %v1870 = vunpack.c.l.b16 %v1862
        %v1871 = vpack.c.b16 %v1868, %v1867
        %v1872 = vpack.c.b16 %v1870, %v1869
        %v1876 = vsel %vm1098, %v1850, 0
        %v1879 = vsel %vm1098, %v1851, 0
        %v1882 = vsel %vm1098, %v1852, 0
        %v1885 = vsel %vm1098, %v1853, 0
        %v1888 = vsel %vm1098, %v1854, 0
        %v1891 = vsel %vm1098, %v1855, 0
        %v1894 = vsel %vm1098, %v1856, 0
        %v1897 = vsel %vm1098, %v1857, 0
        %1899 = vmatprep.subr.bf16.mxu0 0
        %1900 = vmatpush1.bf16.msra.mxu0 0
        %1901 = vmatprep.subr.bf16.mxu0 0
        %1902 = vmatpush1.bf16.msra.mxu0 0
        %1903 = vmatprep.subr.bf16.mxu0 0
        %1904 = vmatpush1.bf16.msra.mxu0 0
        %1905 = vmatprep.subr.bf16.mxu0 0
        %1906 = vmatpush1.bf16.msra.mxu0 0
        %1907 = vmatprep.subr.bf16.mxu0 0
        %1908 = vmatpush1.bf16.msra.mxu0 0
        %1909 = vmatprep.subr.bf16.mxu0 0
        %1910 = vmatpush1.bf16.msra.mxu0 0
        %1911 = vmatprep.subr.bf16.mxu0 0
        %1912 = vmatpush1.bf16.msra.mxu0 %v1872
        %1913 = vmatprep.subr.bf16.mxu0 0
        %1914 = vmatpush1.bf16.msra.mxu0 %v1871
        %1915 = vmatprep.subr.bf16.mxu0 0
        %1916 = vmatpush2.bf16.msra.mxu0 0
        %1917 = vmatprep.subr.bf16.mxu0 0
        %1918 = vmatpush2.bf16.msra.mxu0 0
        %1919 = vmatprep.subr.bf16.mxu0 0
        %1920 = vmatpush2.bf16.msra.mxu0 0
        %1921 = vmatprep.subr.bf16.mxu0 0
        %1922 = vmatpush2.bf16.msra.mxu0 0
        %1923 = vmatprep.subr.bf16.mxu0 0
        %1924 = vmatpush2.bf16.msra.mxu0 0
        %1925 = vmatprep.subr.bf16.mxu0 0
        %1926 = vmatpush2.bf16.msra.mxu0 0
        %1927 = vmatprep.subr.bf16.mxu0 0
        %1928 = vmatpush2.bf16.msra.mxu0 0
        %1929 = vmatprep.subr.bf16.mxu0 0
        %1930 = vmatpush2.bf16.msra.mxu0 0
        %1931 = vmatprep.mubr.bf16.mxu0 0
        %1932 = vmatmul.mubr.bf16.gmra.mxu0 %v1876
        %v1933 = vpop.f32.mrf.mxu0
        %v1934 = vadd.f32 0.0, %v1933
        %v1935 = vpop.f32.mrf.mxu0
        %v1936 = vpop.f32.mrf.mxu0
        %v1937 = vadd.f32 0.0, %v1936
        %v1938 = vpop.f32.mrf.mxu0
        %1939 = vmatprep.mubr.bf16.mxu0 0
        %1940 = vmatmul.mubr.bf16.gmra.mxu0 %v1879
        %v1941 = vpop.f32.mrf.mxu0
        %v1942 = vadd.f32 0.0, %v1941
        %v1943 = vpop.f32.mrf.mxu0
        %v1944 = vpop.f32.mrf.mxu0
        %v1945 = vadd.f32 0.0, %v1944
        %v1946 = vpop.f32.mrf.mxu0
        %1947 = vmatprep.mubr.bf16.mxu0 0
        %1948 = vmatmul.mubr.bf16.gmra.mxu0 %v1882
        %v1949 = vpop.f32.mrf.mxu0
        %v1950 = vadd.f32 0.0, %v1949
        %v1951 = vpop.f32.mrf.mxu0
        %v1952 = vpop.f32.mrf.mxu0
        %v1953 = vadd.f32 0.0, %v1952
        %v1954 = vpop.f32.mrf.mxu0
        %1955 = vmatprep.mubr.bf16.mxu0 0
        %1956 = vmatmul.mubr.bf16.gmra.mxu0 %v1885
        %v1957 = vpop.f32.mrf.mxu0
        %v1958 = vadd.f32 0.0, %v1957
        %v1959 = vpop.f32.mrf.mxu0
        %v1960 = vpop.f32.mrf.mxu0
        %v1961 = vadd.f32 0.0, %v1960
        %v1962 = vpop.f32.mrf.mxu0
        %1963 = vmatprep.mubr.bf16.mxu0 0
        %1964 = vmatmul.mubr.bf16.gmra.mxu0 %v1888
        %v1965 = vpop.f32.mrf.mxu0
        %v1966 = vadd.f32 0.0, %v1965
        %v1967 = vpop.f32.mrf.mxu0
        %v1968 = vpop.f32.mrf.mxu0
        %v1969 = vadd.f32 0.0, %v1968
        %v1970 = vpop.f32.mrf.mxu0
        %1971 = vmatprep.mubr.bf16.mxu0 0
        %1972 = vmatmul.mubr.bf16.gmra.mxu0 %v1891
        %v1973 = vpop.f32.mrf.mxu0
        %v1974 = vadd.f32 0.0, %v1973
        %v1975 = vpop.f32.mrf.mxu0
        %v1976 = vpop.f32.mrf.mxu0
        %v1977 = vadd.f32 0.0, %v1976
        %v1978 = vpop.f32.mrf.mxu0
        %1979 = vmatprep.mubr.bf16.mxu0 0
        %1980 = vmatmul.mubr.bf16.gmra.mxu0 %v1894
        %v1981 = vpop.f32.mrf.mxu0
        %v1982 = vadd.f32 0.0, %v1981
        %v1983 = vpop.f32.mrf.mxu0
        %v1984 = vpop.f32.mrf.mxu0
        %v1985 = vadd.f32 0.0, %v1984
        %v1986 = vpop.f32.mrf.mxu0
        %1987 = vmatprep.mubr.bf16.mxu0 0
        %1988 = vmatmul.mubr.bf16.gmra.mxu0 %v1897
        %v1989 = vpop.f32.mrf.mxu0
        %v1990 = vadd.f32 0.0, %v1989
        %v1991 = vpop.f32.mrf.mxu0
        %v1992 = vpop.f32.mrf.mxu0
        %v1993 = vadd.f32 0.0, %v1992
        %v1994 = vpop.f32.mrf.mxu0
        %1995 = vdwg.mxu0
        %v1996 = vpack.c.bf16 %v1937, %v1934
        %v1997 = vpack.c.bf16 %v1945, %v1942
        %v1998 = vpack.c.bf16 %v1953, %v1950
        %v1999 = vpack.c.bf16 %v1961, %v1958
        %v2000 = vpack.c.bf16 %v1969, %v1966
        %v2001 = vpack.c.bf16 %v1977, %v1974
        %v2002 = vpack.c.bf16 %v1985, %v1982
        %v2003 = vpack.c.bf16 %v1993, %v1990
        %s2004 = scalar_lea.vmem %s5, 1
        %v2005 = vld [vmem:[%s2004] sm:$0x1]
        %v2007 = vlaneseq
        %v2008 = vshrl.u32 %v2007, 7
        %v2009 = vsub.s32 0, %v2008
        %v2010 = vrot.slane %v2005, %v2009
        %2011 = vrot.lane.b32.xlu0 %v2010, 32
        %v2012 = vpop.permute.xlu0 %2011
        %v2014 = vadd.f32 %v1934, %v2012
        %v2015 = vadd.f32 %v1937, %v2012
        %v2016 = vadd.f32 %v1942, %v2012
        %v2017 = vadd.f32 %v1945, %v2012
        %v2018 = vadd.f32 %v1950, %v2012
        %v2019 = vadd.f32 %v1953, %v2012
        %v2020 = vadd.f32 %v1958, %v2012
        %v2021 = vadd.f32 %v1961, %v2012
        %v2022 = vadd.f32 %v1966, %v2012
        %v2023 = vadd.f32 %v1969, %v2012
        %v2024 = vadd.f32 %v1974, %v2012
        %v2025 = vadd.f32 %v1977, %v2012
        %v2026 = vadd.f32 %v1982, %v2012
        %v2027 = vadd.f32 %v1985, %v2012
        %v2028 = vadd.f32 %v1990, %v2012
        %v2029 = vadd.f32 %v1993, %v2012
        %s2030 = scalar_lea.vmem %s4, 4
        %v2031 = vld [vmem:[%s2030] sm:$0xf]
        %v2033 = vsel %vm1351, %v2031, 0
        %2035 = vmatprep.subr.bf16.mxu0 0
        %2036 = vmatpush1.bf16.msra.mxu0 %v2003
        %2037 = vmatprep.subr.bf16.mxu0 0
        %2038 = vmatpush1.bf16.msra.mxu0 %v2002
        %2039 = vmatprep.subr.bf16.mxu0 0
        %2040 = vmatpush1.bf16.msra.mxu0 %v2001
        %2041 = vmatprep.subr.bf16.mxu0 0
        %2042 = vmatpush1.bf16.msra.mxu0 %v2000
        %2043 = vmatprep.subr.bf16.mxu0 0
        %2044 = vmatpush1.bf16.msra.mxu0 %v1999
        %2045 = vmatprep.subr.bf16.mxu0 0
        %2046 = vmatpush1.bf16.msra.mxu0 %v1998
        %2047 = vmatprep.subr.bf16.mxu0 0
        %2048 = vmatpush1.bf16.msra.mxu0 %v1997
        %2049 = vmatprep.subr.bf16.mxu0 0
        %2050 = vmatpush1.bf16.msra.mxu0 %v1996
        %2051 = vmatprep.subr.bf16.mxu0 0
        %2052 = vmatpush2.bf16.msra.mxu0 0
        %2053 = vmatprep.subr.bf16.mxu0 0
        %2054 = vmatpush2.bf16.msra.mxu0 0
        %2055 = vmatprep.subr.bf16.mxu0 0
        %2056 = vmatpush2.bf16.msra.mxu0 0
        %2057 = vmatprep.subr.bf16.mxu0 0
        %2058 = vmatpush2.bf16.msra.mxu0 0
        %2059 = vmatprep.subr.bf16.mxu0 0
        %2060 = vmatpush2.bf16.msra.mxu0 0
        %2061 = vmatprep.subr.bf16.mxu0 0
        %2062 = vmatpush2.bf16.msra.mxu0 0
        %2063 = vmatprep.subr.bf16.mxu0 0
        %2064 = vmatpush2.bf16.msra.mxu0 0
        %2065 = vmatprep.subr.bf16.mxu0 0
        %2066 = vmatpush2.bf16.msra.mxu0 %v2033
        %2067 = vmatprep.mubr.bf16.mxu0 %v1256
        %2068 = vmatmul.mubr.bf16.gmra.mxu0 %v818
        %v2069 = vpop.f32.mrf.mxu0
        %v2070 = vadd.f32 0.0, %v2069
        %v2071 = vpop.f32.mrf.mxu0
        %v2072 = vpop.f32.mrf.mxu0
        %v2073 = vadd.f32 0.0, %v2072
        %v2074 = vpop.f32.mrf.mxu0
        %2075 = vmatprep.mubr.bf16.mxu0 %v1259
        %2076 = vmatmul.mubr.bf16.gmra.mxu0 %v819
        %v2077 = vpop.f32.mrf.mxu0
        %v2078 = vadd.f32 0.0, %v2077
        %v2079 = vpop.f32.mrf.mxu0
        %v2080 = vpop.f32.mrf.mxu0
        %v2081 = vadd.f32 0.0, %v2080
        %v2082 = vpop.f32.mrf.mxu0
        %2083 = vmatprep.mubr.bf16.mxu0 %v1262
        %2084 = vmatmul.mubr.bf16.gmra.mxu0 %v820
        %v2085 = vpop.f32.mrf.mxu0
        %v2086 = vadd.f32 0.0, %v2085
        %v2087 = vpop.f32.mrf.mxu0
        %v2088 = vpop.f32.mrf.mxu0
        %v2089 = vadd.f32 0.0, %v2088
        %v2090 = vpop.f32.mrf.mxu0
        %2091 = vmatprep.mubr.bf16.mxu0 %v1265
        %2092 = vmatmul.mubr.bf16.gmra.mxu0 %v821
        %v2093 = vpop.f32.mrf.mxu0
        %v2094 = vadd.f32 0.0, %v2093
        %v2095 = vpop.f32.mrf.mxu0
        %v2096 = vpop.f32.mrf.mxu0
        %v2097 = vadd.f32 0.0, %v2096
        %v2098 = vpop.f32.mrf.mxu0
        %2099 = vmatprep.mubr.bf16.mxu0 %v1268
        %2100 = vmatmul.mubr.bf16.gmra.mxu0 %v822
        %v2101 = vpop.f32.mrf.mxu0
        %v2102 = vadd.f32 0.0, %v2101
        %v2103 = vpop.f32.mrf.mxu0
        %v2104 = vpop.f32.mrf.mxu0
        %v2105 = vadd.f32 0.0, %v2104
        %v2106 = vpop.f32.mrf.mxu0
        %2107 = vmatprep.mubr.bf16.mxu0 %v1271
        %2108 = vmatmul.mubr.bf16.gmra.mxu0 %v823
        %v2109 = vpop.f32.mrf.mxu0
        %v2110 = vadd.f32 0.0, %v2109
        %v2111 = vpop.f32.mrf.mxu0
        %v2112 = vpop.f32.mrf.mxu0
        %v2113 = vadd.f32 0.0, %v2112
        %v2114 = vpop.f32.mrf.mxu0
        %2115 = vmatprep.mubr.bf16.mxu0 %v1274
        %2116 = vmatmul.mubr.bf16.gmra.mxu0 %v824
        %v2117 = vpop.f32.mrf.mxu0
        %v2118 = vadd.f32 0.0, %v2117
        %v2119 = vpop.f32.mrf.mxu0
        %v2120 = vpop.f32.mrf.mxu0
        %v2121 = vadd.f32 0.0, %v2120
        %v2122 = vpop.f32.mrf.mxu0
        %2123 = vmatprep.mubr.bf16.mxu0 %v1277
        %2124 = vmatmul.mubr.bf16.gmra.mxu0 %v825
        %v2125 = vpop.f32.mrf.mxu0
        %v2126 = vadd.f32 0.0, %v2125
        %v2127 = vpop.f32.mrf.mxu0
        %v2128 = vpop.f32.mrf.mxu0
        %v2129 = vadd.f32 0.0, %v2128
        %v2130 = vpop.f32.mrf.mxu0
        %2131 = vmatprep.mubr.bf16.mxu0 %v1280
        %2132 = vmatmul.mubr.bf16.gmra.mxu0 %v826
        %v2133 = vpop.f32.mrf.mxu0
        %v2134 = vadd.f32 0.0, %v2133
        %v2135 = vpop.f32.mrf.mxu0
        %v2136 = vpop.f32.mrf.mxu0
        %v2137 = vadd.f32 0.0, %v2136
        %v2138 = vpop.f32.mrf.mxu0
        %2139 = vmatprep.mubr.bf16.mxu0 %v1283
        %2140 = vmatmul.mubr.bf16.gmra.mxu0 %v827
        %v2141 = vpop.f32.mrf.mxu0
        %v2142 = vadd.f32 0.0, %v2141
        %v2143 = vpop.f32.mrf.mxu0
        %v2144 = vpop.f32.mrf.mxu0
        %v2145 = vadd.f32 0.0, %v2144
        %v2146 = vpop.f32.mrf.mxu0
        %2147 = vmatprep.mubr.bf16.mxu0 %v1286
        %2148 = vmatmul.mubr.bf16.gmra.mxu0 %v828
        %v2149 = vpop.f32.mrf.mxu0
        %v2150 = vadd.f32 0.0, %v2149
        %v2151 = vpop.f32.mrf.mxu0
        %v2152 = vpop.f32.mrf.mxu0
        %v2153 = vadd.f32 0.0, %v2152
        %v2154 = vpop.f32.mrf.mxu0
        %2155 = vmatprep.mubr.bf16.mxu0 %v1289
        %2156 = vmatmul.mubr.bf16.gmra.mxu0 %v829
        %v2157 = vpop.f32.mrf.mxu0
        %v2158 = vadd.f32 0.0, %v2157
        %v2159 = vpop.f32.mrf.mxu0
        %v2160 = vpop.f32.mrf.mxu0
        %v2161 = vadd.f32 0.0, %v2160
        %v2162 = vpop.f32.mrf.mxu0
        %2163 = vmatprep.mubr.bf16.mxu0 %v1292
        %2164 = vmatmul.mubr.bf16.gmra.mxu0 %v830
        %v2165 = vpop.f32.mrf.mxu0
        %v2166 = vadd.f32 0.0, %v2165
        %v2167 = vpop.f32.mrf.mxu0
        %v2168 = vpop.f32.mrf.mxu0
        %v2169 = vadd.f32 0.0, %v2168
        %v2170 = vpop.f32.mrf.mxu0
        %2171 = vmatprep.mubr.bf16.mxu0 %v1295
        %2172 = vmatmul.mubr.bf16.gmra.mxu0 %v831
        %v2173 = vpop.f32.mrf.mxu0
        %v2174 = vadd.f32 0.0, %v2173
        %v2175 = vpop.f32.mrf.mxu0
        %v2176 = vpop.f32.mrf.mxu0
        %v2177 = vadd.f32 0.0, %v2176
        %v2178 = vpop.f32.mrf.mxu0
        %2179 = vmatprep.mubr.bf16.mxu0 %v1298
        %2180 = vmatmul.mubr.bf16.gmra.mxu0 %v832
        %v2181 = vpop.f32.mrf.mxu0
        %v2182 = vadd.f32 0.0, %v2181
        %v2183 = vpop.f32.mrf.mxu0
        %v2184 = vpop.f32.mrf.mxu0
        %v2185 = vadd.f32 0.0, %v2184
        %v2186 = vpop.f32.mrf.mxu0
        %2187 = vmatprep.mubr.bf16.mxu0 %v1301
        %2188 = vmatmul.mubr.bf16.gmra.mxu0 %v833
        %v2189 = vpop.f32.mrf.mxu0
        %v2190 = vadd.f32 0.0, %v2189
        %v2191 = vpop.f32.mrf.mxu0
        %v2192 = vpop.f32.mrf.mxu0
        %v2193 = vadd.f32 0.0, %v2192
        %v2194 = vpop.f32.mrf.mxu0
        %2195 = vmatprep.mubr.bf16.mxu0 %v1304
        %2196 = vmatmul.mubr.bf16.gmra.mxu0 %v834
        %v2197 = vpop.f32.mrf.mxu0
        %v2198 = vadd.f32 0.0, %v2197
        %v2199 = vpop.f32.mrf.mxu0
        %v2200 = vpop.f32.mrf.mxu0
        %v2201 = vadd.f32 0.0, %v2200
        %v2202 = vpop.f32.mrf.mxu0
        %2203 = vmatprep.mubr.bf16.mxu0 %v1307
        %2204 = vmatmul.mubr.bf16.gmra.mxu0 %v835
        %v2205 = vpop.f32.mrf.mxu0
        %v2206 = vadd.f32 0.0, %v2205
        %v2207 = vpop.f32.mrf.mxu0
        %v2208 = vpop.f32.mrf.mxu0
        %v2209 = vadd.f32 0.0, %v2208
        %v2210 = vpop.f32.mrf.mxu0
        %2211 = vmatprep.mubr.bf16.mxu0 %v1310
        %2212 = vmatmul.mubr.bf16.gmra.mxu0 %v836
        %v2213 = vpop.f32.mrf.mxu0
        %v2214 = vadd.f32 0.0, %v2213
        %v2215 = vpop.f32.mrf.mxu0
        %v2216 = vpop.f32.mrf.mxu0
        %v2217 = vadd.f32 0.0, %v2216
        %v2218 = vpop.f32.mrf.mxu0
        %2219 = vmatprep.mubr.bf16.mxu0 %v1313
        %2220 = vmatmul.mubr.bf16.gmra.mxu0 %v837
        %v2221 = vpop.f32.mrf.mxu0
        %v2222 = vadd.f32 0.0, %v2221
        %v2223 = vpop.f32.mrf.mxu0
        %v2224 = vpop.f32.mrf.mxu0
        %v2225 = vadd.f32 0.0, %v2224
        %v2226 = vpop.f32.mrf.mxu0
        %2227 = vmatprep.mubr.bf16.mxu0 %v1316
        %2228 = vmatmul.mubr.bf16.gmra.mxu0 %v838
        %v2229 = vpop.f32.mrf.mxu0
        %v2230 = vadd.f32 0.0, %v2229
        %v2231 = vpop.f32.mrf.mxu0
        %v2232 = vpop.f32.mrf.mxu0
        %v2233 = vadd.f32 0.0, %v2232
        %v2234 = vpop.f32.mrf.mxu0
        %2235 = vmatprep.mubr.bf16.mxu0 %v1319
        %2236 = vmatmul.mubr.bf16.gmra.mxu0 %v839
        %v2237 = vpop.f32.mrf.mxu0
        %v2238 = vadd.f32 0.0, %v2237
        %v2239 = vpop.f32.mrf.mxu0
        %v2240 = vpop.f32.mrf.mxu0
        %v2241 = vadd.f32 0.0, %v2240
        %v2242 = vpop.f32.mrf.mxu0
        %2243 = vmatprep.mubr.bf16.mxu0 %v1322
        %2244 = vmatmul.mubr.bf16.gmra.mxu0 %v840
        %v2245 = vpop.f32.mrf.mxu0
        %v2246 = vadd.f32 0.0, %v2245
        %v2247 = vpop.f32.mrf.mxu0
        %v2248 = vpop.f32.mrf.mxu0
        %v2249 = vadd.f32 0.0, %v2248
        %v2250 = vpop.f32.mrf.mxu0
        %2251 = vmatprep.mubr.bf16.mxu0 %v1325
        %2252 = vmatmul.mubr.bf16.gmra.mxu0 %v841
        %v2253 = vpop.f32.mrf.mxu0
        %v2254 = vadd.f32 0.0, %v2253
        %v2255 = vpop.f32.mrf.mxu0
        %v2256 = vpop.f32.mrf.mxu0
        %v2257 = vadd.f32 0.0, %v2256
        %v2258 = vpop.f32.mrf.mxu0
        %2259 = vmatprep.mubr.bf16.mxu0 %v1328
        %2260 = vmatmul.mubr.bf16.gmra.mxu0 %v842
        %v2261 = vpop.f32.mrf.mxu0
        %v2262 = vadd.f32 0.0, %v2261
        %v2263 = vpop.f32.mrf.mxu0
        %v2264 = vpop.f32.mrf.mxu0
        %v2265 = vadd.f32 0.0, %v2264
        %v2266 = vpop.f32.mrf.mxu0
        %2267 = vmatprep.mubr.bf16.mxu0 %v1331
        %2268 = vmatmul.mubr.bf16.gmra.mxu0 %v843
        %v2269 = vpop.f32.mrf.mxu0
        %v2270 = vadd.f32 0.0, %v2269
        %v2271 = vpop.f32.mrf.mxu0
        %v2272 = vpop.f32.mrf.mxu0
        %v2273 = vadd.f32 0.0, %v2272
        %v2274 = vpop.f32.mrf.mxu0
        %2275 = vmatprep.mubr.bf16.mxu0 %v1334
        %2276 = vmatmul.mubr.bf16.gmra.mxu0 %v844
        %v2277 = vpop.f32.mrf.mxu0
        %v2278 = vadd.f32 0.0, %v2277
        %v2279 = vpop.f32.mrf.mxu0
        %v2280 = vpop.f32.mrf.mxu0
        %v2281 = vadd.f32 0.0, %v2280
        %v2282 = vpop.f32.mrf.mxu0
        %2283 = vmatprep.mubr.bf16.mxu0 %v1337
        %2284 = vmatmul.mubr.bf16.gmra.mxu0 %v845
        %v2285 = vpop.f32.mrf.mxu0
        %v2286 = vadd.f32 0.0, %v2285
        %v2287 = vpop.f32.mrf.mxu0
        %v2288 = vpop.f32.mrf.mxu0
        %v2289 = vadd.f32 0.0, %v2288
        %v2290 = vpop.f32.mrf.mxu0
        %2291 = vmatprep.mubr.bf16.mxu0 %v1340
        %2292 = vmatmul.mubr.bf16.gmra.mxu0 %v846
        %v2293 = vpop.f32.mrf.mxu0
        %v2294 = vadd.f32 0.0, %v2293
        %v2295 = vpop.f32.mrf.mxu0
        %v2296 = vpop.f32.mrf.mxu0
        %v2297 = vadd.f32 0.0, %v2296
        %v2298 = vpop.f32.mrf.mxu0
        %2299 = vmatprep.mubr.bf16.mxu0 %v1343
        %2300 = vmatmul.mubr.bf16.gmra.mxu0 %v847
        %v2301 = vpop.f32.mrf.mxu0
        %v2302 = vadd.f32 0.0, %v2301
        %v2303 = vpop.f32.mrf.mxu0
        %v2304 = vpop.f32.mrf.mxu0
        %v2305 = vadd.f32 0.0, %v2304
        %v2306 = vpop.f32.mrf.mxu0
        %2307 = vmatprep.mubr.bf16.mxu0 %v1346
        %2308 = vmatmul.mubr.bf16.gmra.mxu0 %v848
        %v2309 = vpop.f32.mrf.mxu0
        %v2310 = vadd.f32 0.0, %v2309
        %v2311 = vpop.f32.mrf.mxu0
        %v2312 = vpop.f32.mrf.mxu0
        %v2313 = vadd.f32 0.0, %v2312
        %v2314 = vpop.f32.mrf.mxu0
        %2315 = vmatprep.mubr.bf16.mxu0 %v1349
        %2316 = vmatmul.mubr.bf16.gmra.mxu0 %v849
        %v2317 = vpop.f32.mrf.mxu0
        %v2318 = vadd.f32 0.0, %v2317
        %v2319 = vpop.f32.mrf.mxu0
        %v2320 = vpop.f32.mrf.mxu0
        %v2321 = vadd.f32 0.0, %v2320
        %v2322 = vpop.f32.mrf.mxu0
        %2323 = vdwg.mxu0
        %v2324 = vmax.f32 %v2070, %v2134
        %v2325 = vmax.f32 %v2073, %v2137
        %v2326 = vmax.f32 %v2078, %v2142
        %v2327 = vmax.f32 %v2081, %v2145
        %v2328 = vmax.f32 %v2086, %v2150
        %v2329 = vmax.f32 %v2089, %v2153
        %v2330 = vmax.f32 %v2094, %v2158
        %v2331 = vmax.f32 %v2097, %v2161
        %v2332 = vmax.f32 %v2102, %v2166
        %v2333 = vmax.f32 %v2105, %v2169
        %v2334 = vmax.f32 %v2110, %v2174
        %v2335 = vmax.f32 %v2113, %v2177
        %v2336 = vmax.f32 %v2118, %v2182
        %v2337 = vmax.f32 %v2121, %v2185
        %v2338 = vmax.f32 %v2126, %v2190
        %v2339 = vmax.f32 %v2129, %v2193
        %v2340 = vmax.f32 %v2324, %v2198
        %v2341 = vmax.f32 %v2325, %v2201
        %v2342 = vmax.f32 %v2326, %v2206
        %v2343 = vmax.f32 %v2327, %v2209
        %v2344 = vmax.f32 %v2328, %v2214
        %v2345 = vmax.f32 %v2329, %v2217
        %v2346 = vmax.f32 %v2330, %v2222
        %v2347 = vmax.f32 %v2331, %v2225
        %v2348 = vmax.f32 %v2332, %v2230
        %v2349 = vmax.f32 %v2333, %v2233
        %v2350 = vmax.f32 %v2334, %v2238
        %v2351 = vmax.f32 %v2335, %v2241
        %v2352 = vmax.f32 %v2336, %v2246
        %v2353 = vmax.f32 %v2337, %v2249
        %v2354 = vmax.f32 %v2338, %v2254
        %v2355 = vmax.f32 %v2339, %v2257
        %v2356 = vmax.f32 %v2340, %v2262
        %v2357 = vmax.f32 %v2341, %v2265
        %v2358 = vmax.f32 %v2342, %v2270
        %v2359 = vmax.f32 %v2343, %v2273
        %v2360 = vmax.f32 %v2344, %v2278
        %v2361 = vmax.f32 %v2345, %v2281
        %v2362 = vmax.f32 %v2346, %v2286
        %v2363 = vmax.f32 %v2347, %v2289
        %v2364 = vmax.f32 %v2348, %v2294
        %v2365 = vmax.f32 %v2349, %v2297
        %v2366 = vmax.f32 %v2350, %v2302
        %v2367 = vmax.f32 %v2351, %v2305
        %v2368 = vmax.f32 %v2352, %v2310
        %v2369 = vmax.f32 %v2353, %v2313
        %v2370 = vmax.f32 %v2354, %v2318
        %v2371 = vmax.f32 %v2355, %v2321
        %2388 = vrot.lane.b32.xlu0 %v2014, 96
        %v2389 = vpop.permute.xlu0 %2388
        %2390 = vrot.lane.b32.xlu0 %v2015, 96
        %v2391 = vpop.permute.xlu0 %2390
        %2392 = vrot.lane.b32.xlu0 %v2016, 96
        %v2393 = vpop.permute.xlu0 %2392
        %2394 = vrot.lane.b32.xlu0 %v2017, 96
        %v2395 = vpop.permute.xlu0 %2394
        %2396 = vrot.lane.b32.xlu0 %v2018, 96
        %v2397 = vpop.permute.xlu0 %2396
        %2398 = vrot.lane.b32.xlu0 %v2019, 96
        %v2399 = vpop.permute.xlu0 %2398
        %2400 = vrot.lane.b32.xlu0 %v2020, 96
        %v2401 = vpop.permute.xlu0 %2400
        %2402 = vrot.lane.b32.xlu0 %v2021, 96
        %v2403 = vpop.permute.xlu0 %2402
        %2404 = vrot.lane.b32.xlu0 %v2022, 96
        %v2405 = vpop.permute.xlu0 %2404
        %2406 = vrot.lane.b32.xlu0 %v2023, 96
        %v2407 = vpop.permute.xlu0 %2406
        %2408 = vrot.lane.b32.xlu0 %v2024, 96
        %v2409 = vpop.permute.xlu0 %2408
        %2410 = vrot.lane.b32.xlu0 %v2025, 96
        %v2411 = vpop.permute.xlu0 %2410
        %2412 = vrot.lane.b32.xlu0 %v2026, 96
        %v2413 = vpop.permute.xlu0 %2412
        %2414 = vrot.lane.b32.xlu0 %v2027, 96
        %v2415 = vpop.permute.xlu0 %2414
        %2416 = vrot.lane.b32.xlu0 %v2028, 96
        %v2417 = vpop.permute.xlu0 %2416
        %2418 = vrot.lane.b32.xlu0 %v2029, 96
        %v2419 = vpop.permute.xlu0 %2418
        %v2436 = vadd.f32 %v2356, %v2389
        %v2437 = vadd.f32 %v2357, %v2391
        %v2438 = vadd.f32 %v2358, %v2393
        %v2439 = vadd.f32 %v2359, %v2395
        %v2440 = vadd.f32 %v2360, %v2397
        %v2441 = vadd.f32 %v2361, %v2399
        %v2442 = vadd.f32 %v2362, %v2401
        %v2443 = vadd.f32 %v2363, %v2403
        %v2444 = vadd.f32 %v2364, %v2405
        %v2445 = vadd.f32 %v2365, %v2407
        %v2446 = vadd.f32 %v2366, %v2409
        %v2447 = vadd.f32 %v2367, %v2411
        %v2448 = vadd.f32 %v2368, %v2413
        %v2449 = vadd.f32 %v2369, %v2415
        %v2450 = vadd.f32 %v2370, %v2417
        %v2451 = vadd.f32 %v2371, %v2419
        %v2452 = vmax.f32 %v2436, 0.0
        %v2453 = vmax.f32 %v2437, 0.0
        %v2454 = vmax.f32 %v2438, 0.0
        %v2455 = vmax.f32 %v2439, 0.0
        %v2456 = vmax.f32 %v2440, 0.0
        %v2457 = vmax.f32 %v2441, 0.0
        %v2458 = vmax.f32 %v2442, 0.0
        %v2459 = vmax.f32 %v2443, 0.0
        %v2460 = vmax.f32 %v2444, 0.0
        %v2461 = vmax.f32 %v2445, 0.0
        %v2462 = vmax.f32 %v2446, 0.0
        %v2463 = vmax.f32 %v2447, 0.0
        %v2464 = vmax.f32 %v2448, 0.0
        %v2465 = vmax.f32 %v2449, 0.0
        %v2466 = vmax.f32 %v2450, 0.0
        %v2467 = vmax.f32 %v2451, 0.0
        %s2468 = scalar_lea.vmem %s6, 1
        %v2469 = vld [vmem:[%s2468] sm:$0x1]
        %v2471 = vlaneseq
        %v2472 = vshrl.u32 %v2471, 7
        %v2473 = vsub.s32 0, %v2472
        %v2474 = vrot.slane %v2469, %v2473
        %v2476 = vmul.f32 %v2452, %v2474
        %v2477 = vmul.f32 %v2453, %v2474
        %v2478 = vmul.f32 %v2454, %v2474
        %v2479 = vmul.f32 %v2455, %v2474
        %v2480 = vmul.f32 %v2456, %v2474
        %v2481 = vmul.f32 %v2457, %v2474
        %v2482 = vmul.f32 %v2458, %v2474
        %v2483 = vmul.f32 %v2459, %v2474
        %v2484 = vmul.f32 %v2460, %v2474
        %v2485 = vmul.f32 %v2461, %v2474
        %v2486 = vmul.f32 %v2462, %v2474
        %v2487 = vmul.f32 %v2463, %v2474
        %v2488 = vmul.f32 %v2464, %v2474
        %v2489 = vmul.f32 %v2465, %v2474
        %v2490 = vmul.f32 %v2466, %v2474
        %v2491 = vmul.f32 %v2467, %v2474
        %s2492 = scalar_lea.vmem %s7, 1
        %v2493 = vld [vmem:[%s2492] sm:$0x1]
        %v2495 = vlaneseq
        %v2496 = vshrl.u32 %v2495, 7
        %v2497 = vsub.s32 0, %v2496
        %v2498 = vrot.slane %v2493, %v2497
        %v2500 = vadd.f32 %v2476, %v2498
        %v2501 = vadd.f32 %v2477, %v2498
        %v2502 = vadd.f32 %v2478, %v2498
        %v2503 = vadd.f32 %v2479, %v2498
        %v2504 = vadd.f32 %v2480, %v2498
        %v2505 = vadd.f32 %v2481, %v2498
        %v2506 = vadd.f32 %v2482, %v2498
        %v2507 = vadd.f32 %v2483, %v2498
        %v2508 = vadd.f32 %v2484, %v2498
        %v2509 = vadd.f32 %v2485, %v2498
        %v2510 = vadd.f32 %v2486, %v2498
        %v2511 = vadd.f32 %v2487, %v2498
        %v2512 = vadd.f32 %v2488, %v2498
        %v2513 = vadd.f32 %v2489, %v2498
        %v2514 = vadd.f32 %v2490, %v2498
        %v2515 = vadd.f32 %v2491, %v2498
        %v2516 = vadd.f32 %v2500, %v1834
        %v2517 = vadd.f32 %v2501, %v1835
        %v2518 = vadd.f32 %v2502, %v1836
        %v2519 = vadd.f32 %v2503, %v1837
        %v2520 = vadd.f32 %v2504, %v1838
        %v2521 = vadd.f32 %v2505, %v1839
        %v2522 = vadd.f32 %v2506, %v1840
        %v2523 = vadd.f32 %v2507, %v1841
        %v2524 = vadd.f32 %v2508, %v1842
        %v2525 = vadd.f32 %v2509, %v1843
        %v2526 = vadd.f32 %v2510, %v1844
        %v2527 = vadd.f32 %v2511, %v1845
        %v2528 = vadd.f32 %v2512, %v1846
        %v2529 = vadd.f32 %v2513, %v1847
        %v2530 = vadd.f32 %v2514, %v1848
        %v2531 = vadd.f32 %v2515, %v1849
        %2548 = vrot.lane.b32.xlu0 %v1834, 32
        %v2549 = vpop.permute.xlu0 %2548
        %2550 = vrot.lane.b32.xlu0 %v1835, 32
        %v2551 = vpop.permute.xlu0 %2550
        %2552 = vrot.lane.b32.xlu0 %v1836, 32
        %v2553 = vpop.permute.xlu0 %2552
        %2554 = vrot.lane.b32.xlu0 %v1837, 32
        %v2555 = vpop.permute.xlu0 %2554
        %2556 = vrot.lane.b32.xlu0 %v1838, 32
        %v2557 = vpop.permute.xlu0 %2556
        %2558 = vrot.lane.b32.xlu0 %v1839, 32
        %v2559 = vpop.permute.xlu0 %2558
        %2560 = vrot.lane.b32.xlu0 %v1840, 32
        %v2561 = vpop.permute.xlu0 %2560
        %2562 = vrot.lane.b32.xlu0 %v1841, 32
        %v2563 = vpop.permute.xlu0 %2562
        %2564 = vrot.lane.b32.xlu0 %v1842, 32
        %v2565 = vpop.permute.xlu0 %2564
        %2566 = vrot.lane.b32.xlu0 %v1843, 32
        %v2567 = vpop.permute.xlu0 %2566
        %2568 = vrot.lane.b32.xlu0 %v1844, 32
        %v2569 = vpop.permute.xlu0 %2568
        %2570 = vrot.lane.b32.xlu0 %v1845, 32
        %v2571 = vpop.permute.xlu0 %2570
        %2572 = vrot.lane.b32.xlu0 %v1846, 32
        %v2573 = vpop.permute.xlu0 %2572
        %2574 = vrot.lane.b32.xlu0 %v1847, 32
        %v2575 = vpop.permute.xlu0 %2574
        %2576 = vrot.lane.b32.xlu0 %v1848, 32
        %v2577 = vpop.permute.xlu0 %2576
        %2578 = vrot.lane.b32.xlu0 %v1849, 32
        %v2579 = vpop.permute.xlu0 %2578
        %2612 = vrot.lane.b32.xlu0 %v2516, 64
        %v2613 = vpop.permute.xlu0 %2612
        %2614 = vrot.lane.b32.xlu0 %v2517, 64
        %v2615 = vpop.permute.xlu0 %2614
        %2616 = vrot.lane.b32.xlu0 %v2518, 64
        %v2617 = vpop.permute.xlu0 %2616
        %2618 = vrot.lane.b32.xlu0 %v2519, 64
        %v2619 = vpop.permute.xlu0 %2618
        %2620 = vrot.lane.b32.xlu0 %v2520, 64
        %v2621 = vpop.permute.xlu0 %2620
        %2622 = vrot.lane.b32.xlu0 %v2521, 64
        %v2623 = vpop.permute.xlu0 %2622
        %2624 = vrot.lane.b32.xlu0 %v2522, 64
        %v2625 = vpop.permute.xlu0 %2624
        %2626 = vrot.lane.b32.xlu0 %v2523, 64
        %v2627 = vpop.permute.xlu0 %2626
        %2628 = vrot.lane.b32.xlu0 %v2524, 64
        %v2629 = vpop.permute.xlu0 %2628
        %2630 = vrot.lane.b32.xlu0 %v2525, 64
        %v2631 = vpop.permute.xlu0 %2630
        %2632 = vrot.lane.b32.xlu0 %v2526, 64
        %v2633 = vpop.permute.xlu0 %2632
        %2634 = vrot.lane.b32.xlu0 %v2527, 64
        %v2635 = vpop.permute.xlu0 %2634
        %2636 = vrot.lane.b32.xlu0 %v2528, 64
        %v2637 = vpop.permute.xlu0 %2636
        %2638 = vrot.lane.b32.xlu0 %v2529, 64
        %v2639 = vpop.permute.xlu0 %2638
        %2640 = vrot.lane.b32.xlu0 %v2530, 64
        %v2641 = vpop.permute.xlu0 %2640
        %2642 = vrot.lane.b32.xlu0 %v2531, 64
        %v2643 = vpop.permute.xlu0 %2642
        %v2660 = vsel %vm1098, %v352, %v2549
        %v2661 = vsel %vm1098, %v353, %v2551
        %v2662 = vsel %vm1098, %v354, %v2553
        %v2663 = vsel %vm1098, %v355, %v2555
        %v2664 = vsel %vm1098, %v356, %v2557
        %v2665 = vsel %vm1098, %v357, %v2559
        %v2666 = vsel %vm1098, %v358, %v2561
        %v2667 = vsel %vm1098, %v359, %v2563
        %v2668 = vsel %vm1098, %v360, %v2565
        %v2669 = vsel %vm1098, %v361, %v2567
        %v2670 = vsel %vm1098, %v362, %v2569
        %v2671 = vsel %vm1098, %v363, %v2571
        %v2672 = vsel %vm1098, %v364, %v2573
        %v2673 = vsel %vm1098, %v365, %v2575
        %v2674 = vsel %vm1098, %v366, %v2577
        %v2675 = vsel %vm1098, %v367, %v2579
        %vm2676 = vcmask 523264
        %v2677 = vsel %vm2676, %v2660, %v2613
        %v2678 = vsel %vm2676, %v2661, %v2615
        %v2679 = vsel %vm2676, %v2662, %v2617
        %v2680 = vsel %vm2676, %v2663, %v2619
        %v2681 = vsel %vm2676, %v2664, %v2621
        %v2682 = vsel %vm2676, %v2665, %v2623
        %v2683 = vsel %vm2676, %v2666, %v2625
        %v2684 = vsel %vm2676, %v2667, %v2627
        %v2685 = vsel %vm2676, %v2668, %v2629
        %v2686 = vsel %vm2676, %v2669, %v2631
        %v2687 = vsel %vm2676, %v2670, %v2633
        %v2688 = vsel %vm2676, %v2671, %v2635
        %v2689 = vsel %vm2676, %v2672, %v2637
        %v2690 = vsel %vm2676, %v2673, %v2639
        %v2691 = vsel %vm2676, %v2674, %v2641
        %v2692 = vsel %vm2676, %v2675, %v2643
        %vm2693 = vcmask 785408
        %v2694 = vsel %vm2693, %v2677, 0.0
        %v2695 = vsel %vm2693, %v2678, 0.0
        %v2696 = vsel %vm2693, %v2679, 0.0
        %v2697 = vsel %vm2693, %v2680, 0.0
        %v2698 = vsel %vm2693, %v2681, 0.0
        %v2699 = vsel %vm2693, %v2682, 0.0
        %v2700 = vsel %vm2693, %v2683, 0.0
        %v2701 = vsel %vm2693, %v2684, 0.0
        %v2702 = vsel %vm2693, %v2685, 0.0
        %v2703 = vsel %vm2693, %v2686, 0.0
        %v2704 = vsel %vm2693, %v2687, 0.0
        %v2705 = vsel %vm2693, %v2688, 0.0
        %v2706 = vsel %vm2693, %v2689, 0.0
        %v2707 = vsel %vm2693, %v2690, 0.0
        %v2708 = vsel %vm2693, %v2691, 0.0
        %v2709 = vsel %vm2693, %v2692, 0.0
        %2710 = vst [vmem:[%s331] sm:$0xff] %v2694
        %2711 = vst [vmem:[%s331 + $0x8] sm:$0xff] %v2695
        %2712 = vst [vmem:[%s331 + $0x10] sm:$0xff] %v2696
        %2713 = vst [vmem:[%s331 + $0x18] sm:$0xff] %v2697
        %2714 = vst [vmem:[%s331 + $0x20] sm:$0xff] %v2698
        %2715 = vst [vmem:[%s331 + $0x28] sm:$0xff] %v2699
        %2716 = vst [vmem:[%s331 + $0x30] sm:$0xff] %v2700
        %2717 = vst [vmem:[%s331 + $0x38] sm:$0xff] %v2701
        %2718 = vst [vmem:[%s331 + $0x40] sm:$0xff] %v2702
        %2719 = vst [vmem:[%s331 + $0x48] sm:$0xff] %v2703
        %2720 = vst [vmem:[%s331 + $0x50] sm:$0xff] %v2704
        %2721 = vst [vmem:[%s331 + $0x58] sm:$0xff] %v2705
        %2722 = vst [vmem:[%s331 + $0x60] sm:$0xff] %v2706
        %2723 = vst [vmem:[%s331 + $0x68] sm:$0xff] %v2707
        %2724 = vst [vmem:[%s331 + $0x70] sm:$0xff] %v2708
        %2725 = vst [vmem:[%s331 + $0x78] sm:$0xff] %v2709
        %s2726 = sand.u32 %s213, 1
        %s2727 = scalar_lea.sflag [#allocation3], %s2726
        %s2728 = sand.u32 %s213, 1
        %s2729 = smul.addr %s2728, 128
        %s2730 = scalar_lea.vmem [#allocation2], %s2729
        // Predicated region
        $region53: #{tpu_custom_call.1} parent=51 // pred_check
          %p2731 = pneg %p223
        $region54: #{tpu_custom_call.1} parent=51 // pred_check_branch
          %2733 = sbr.rel (%p2731) target = $region56
        $region55: #{tpu_custom_call.1} parent=51 // pred_region
          %s2734 = smul.u32 16, %s22
          %s2736 = ssub.s32 2048, 2048
          %2737 = vsyncadd %s2727, %s2736
          %s2738 = smul.addr %s2734, 128
          %s2739 = scalar_lea.hbm %s8, %s2738
          %s2740 = sshll.u32 %s2730, 4
          %s2741 = int_to_ptr.vmem [resolvable:$true] %s2740
          %2746 = dma.vmem_to_hbm [thread:$0]  %s2741, 2048, %s2739, %s2727, 128, 128, 8
        $region56: #{tpu_custom_call.1} parent=51 // pred_fallthru
          _
      $region52: #{tpu_custom_call.1} parent=5 // pred_fallthru
        _
      %p2747 = scmp.le.s32.totalorder 2, %s17
      // Predicated region
      $region57: #{tpu_custom_call.1} parent=5 // pred_check
        %p2748 = pneg %p2747
      $region58: #{tpu_custom_call.1} parent=5 // pred_check_branch
        %2750 = sbr.rel (%p2748) target = $region60
      $region59: #{tpu_custom_call.1} parent=5 // pred_region
        %s2751 = ssub.s32 %s17, 2
        // Predicated region
        $region61: #{tpu_custom_call.1} parent=59 // pred_check
          %p2752 = pneg %p229
        $region62: #{tpu_custom_call.1} parent=59 // pred_check_branch
          %2754 = sbr.rel (%p2752) target = $region64
        $region63: #{tpu_custom_call.1} parent=59 // pred_region
          %s2755 = sand.u32 %s214, 1
          %s2756 = scalar_lea.sflag [#allocation3], %s2755
          %s2757 = sand.u32 %s214, 1
          %s2758 = smul.addr %s2757, 128
          %s2759 = scalar_lea.vmem [#allocation2], %s2758
          %2760 = dma.done %s2756, 2048
        $region64: #{tpu_custom_call.1} parent=59 // pred_fallthru
          _
      $region60: #{tpu_custom_call.1} parent=5 // pred_fallthru
        _
    $region6: #{tpu_custom_call.1} parent=1 // loop_footer
      %s21 = sadd.s32 1, %s17
    $region7: #{tpu_custom_call.1} parent=1 // loop_footer_branch
      %16 = sbr.rel target = $region3
    $region8: #{tpu_custom_call.1} parent=1 // loop_exit
      _
    %2761 = vsyncpa [#allocation3], 1
    %s2762 = scalar_lea.sflag [#allocation3], 1
    %2763 = vsyncpa %s2762, 1

</llo_original>
